<compile_context>
chip_gen: v5e
topology: v5e:2x2
jax: 0.10.0
libtpu: 0.0.40
codegen_flags: <defaults>
</compile_context>

<pallas_src>
import math
import numpy as np
import jax
import jax.numpy as jnp
from jax.experimental import pallas as pl
from jax.experimental.pallas import tpu as pltpu

EPS = 1e-5        # nn.LayerNorm default
NEG_INF = -1e30   # additive mask for cross-batch attention entries


# ----------------------------- shared math --------------------------------
def _layernorm(x, g, b):
    mu = jnp.mean(x, axis=-1, keepdims=True)
    var = jnp.mean((x - mu) ** 2, axis=-1, keepdims=True)
    return (x - mu) * jax.lax.rsqrt(var + EPS) * g + b


def _gelu_tanh(x):
    # tanh-approx GELU; tanh runs on the EUP slot (review item 7).
    c = math.sqrt(2.0 / math.pi)
    return 0.5 * x * (1.0 + jnp.tanh(c * (x + 0.044715 * x * x * x)))


# ------------------------------ fused forward -------------------------------
def vit_forward(x, params):
    """Single fused pallas_call; grid iterates encoder layers."""
    H = params["num_heads"]
    wp, bp, cls, pos = params["patch"]
    hg, hb, wh, bh = params["head"]
    layers = params["layers"]

    B, N, P = x.shape
    S = N + 1
    E = wp.shape[1]
    HD = E // H
    T = B * S
    L = len(layers)
    C = wh.shape[1]
    inv_scale = 1.0 / math.sqrt(E)      # module scales by sqrt(embedded_vec_dim)
    bf16 = jnp.bfloat16

    # ------- layout-only prep (all module math stays inside the kernel) -----
    x2 = x.reshape(B * N, P)                                   # (B*N, P)

    # placement matrix: projected patch j of batch b -> token row b*S+1+j
    a_np = np.zeros((T, B * N), np.float32)
    for b in range(B):
        for j in range(N):
            a_np[b * S + 1 + j, b * N + j] = 1.0
    a_proj = jnp.asarray(a_np, dtype=bf16)

    # per-token additive base: pos embedding (+ class token on class rows,
    # + linear-proj bias on patch rows).  Depends only on parameters.
    is_cls = jnp.asarray((np.arange(T) % S == 0).astype(np.float32))[:, None]
    base = jnp.tile(pos, (B, 1)) + is_cls * cls + (1.0 - is_cls) * bp   # (T, E)

    # block-diagonal batch mask so all B sequences share one (T, T) attention
    mask_np = np.kron(np.eye(B), np.ones((S, S), np.float32))
    mask_bias = jnp.asarray(np.where(mask_np > 0.5, 0.0, NEG_INF).astype(np.float32))

    # stack per-layer weights on a leading L axis (pipelined over the grid);
    # fuse the q/k/v projections into one (E, 3E) matmul.
    g1 = jnp.stack([p[0] for p in layers]); b1 = jnp.stack([p[1] for p in layers])
    wqkv = jnp.stack([jnp.concatenate([p[2], p[4], p[6]], axis=1)
                      for p in layers]).astype(bf16)
    bqkv = jnp.stack([jnp.concatenate([p[3], p[5], p[7]], axis=1) for p in layers])
    g2 = jnp.stack([p[8] for p in layers]); b2 = jnp.stack([p[9] for p in layers])
    w1 = jnp.stack([p[10] for p in layers]).astype(bf16)
    bm1 = jnp.stack([p[11] for p in layers])
    w2 = jnp.stack([p[12] for p in layers]).astype(bf16)
    bm2 = jnp.stack([p[13] for p in layers])
    wp_b = wp.astype(bf16)
    wh_b = wh.astype(bf16)

    def kernel(x_ref, aproj_ref, wp_ref, base_ref, mask_ref,
               g1_ref, b1_ref, wqkv_ref, bqkv_ref, g2_ref, b2_ref,
               w1_ref, bm1_ref, w2_ref, bm2_ref,
               hg_ref, hb_ref, wh_ref, bh_ref,
               logits_ref, attn_ref, tok_ref):
        l = pl.program_id(0)

        # ---- patch embedding (runs once, at layer step 0) ------------------
        @pl.when(l == 0)
        def _():
            proj = jnp.dot(x_ref[...].astype(bf16), wp_ref[...],
                           preferred_element_type=jnp.float32)        # (B*N, E)
            placed = jnp.dot(aproj_ref[...], proj.astype(bf16),
                             preferred_element_type=jnp.float32)      # (T, E)
            tok_ref[...] = base_ref[...] + placed
            # dropout: identity at inference

        # ---- encoder layer l -----------------------------------------------
        xb = tok_ref[...]                                             # (T, E) f32
        z = _layernorm(xb, g1_ref[...], b1_ref[...])
        qkv = jnp.dot(z.astype(bf16), wqkv_ref[...],
                      preferred_element_type=jnp.float32) + bqkv_ref[...]  # (T,3E)
        q = qkv[:, 0:E]
        k = qkv[:, E:2 * E]
        v = qkv[:, 2 * E:3 * E]

        mask = mask_ref[...]
        col = jax.lax.broadcasted_iota(jnp.int32, (1, E), 1)
        acc = jnp.zeros((T, E), jnp.float32)
        for h in range(H):
            c0 = h * HD
            # column mask selects head h's channels; avoids sub-lane-tile
            # slices and the lane-axis concat (MXU padding makes the extra
            # zeroed columns free).
            mh = ((col >= c0) & (col < c0 + HD)).astype(jnp.float32)  # (1, E)
            qh = (q * mh).astype(bf16)
            kh = (k * mh).astype(bf16)
            vh = (v * mh).astype(bf16)
            s = jax.lax.dot_general(qh, kh, (((1,), (1,)), ((), ())),
                                    preferred_element_type=jnp.float32)
            s = s * inv_scale + mask          # block-diagonal batch mask
            s = s - jnp.max(s, axis=-1, keepdims=True)
            e = jnp.exp(s)
            p = e * pl.reciprocal(jnp.sum(e, axis=-1, keepdims=True), approx=True)
            attn_ref[h] = p                   # (T, T); per-batch blocks cut outside
            acc = acc + jnp.dot(p.astype(bf16), vh,
                                preferred_element_type=jnp.float32)
        x_attn = xb + acc                     # attn/dropout: identity at inference

        z2 = _layernorm(x_attn, g2_ref[...], b2_ref[...])
        h1 = _gelu_tanh(jnp.dot(z2.astype(bf16), w1_ref[...],
                                preferred_element_type=jnp.float32) + bm1_ref[...])
        ffn = jnp.dot(h1.astype(bf16), w2_ref[...],
                      preferred_element_type=jnp.float32) + bm2_ref[...]
        x_out = x_attn + ffn
        tok_ref[...] = x_out                  # residual stream stays in VMEM

        # ---- classification head (runs once, at the last layer step) -------
        @pl.when(l == L - 1)
        def _():
            x0 = x_out[0:S, :]    # module applies head to x[0, :]   # TODO(synk)
            z3 = _layernorm(x0, hg_ref[...], hb_ref[...])
            logits_ref[...] = jnp.dot(z3.astype(bf16), wh_ref[...],
                                      preferred_element_type=jnp.float32) + bh_ref[...]

    def rep(a):                          # same full block every layer step
        nd = a.ndim
        return pl.BlockSpec(a.shape, lambda l, _n=nd: (0,) * _n)

    def per_layer(a):                    # layer-l slice of an L-stacked tensor
        nd = a.ndim
        return pl.BlockSpec((None,) + a.shape[1:],
                            lambda l, _n=nd: (l,) + (0,) * (_n - 1))

    in_specs = [rep(x2), rep(a_proj), rep(wp_b), rep(base), rep(mask_bias),
                per_layer(g1), per_layer(b1), per_layer(wqkv), per_layer(bqkv),
                per_layer(g2), per_layer(b2),
                per_layer(w1), per_layer(bm1), per_layer(w2), per_layer(bm2),
                rep(hg), rep(hb), rep(wh_b), rep(bh)]
    out_specs = (pl.BlockSpec((S, C), lambda l: (0, 0)),
                 pl.BlockSpec((None, H, T, T), lambda l: (l, 0, 0, 0)))
    out_shape = (jax.ShapeDtypeStruct((S, C), jnp.float32),
                 jax.ShapeDtypeStruct((L, H, T, T), jnp.float32))

    logits, attn_full = pl.pallas_call(
        kernel,
        out_shape=out_shape,
        grid_spec=pltpu.PrefetchScalarGridSpec(
            num_scalar_prefetch=0,
            grid=(L,),
            in_specs=in_specs,
            out_specs=out_specs,
            scratch_shapes=[pltpu.VMEM((T, E), jnp.float32)]),
        # TODO(synk): on v7x add a "parallel" batch/sequence grid axis so both
        # TensorCores are used; at these tiny sizes a single core is right.
        compiler_params=pltpu.CompilerParams(
            dimension_semantics=("arbitrary",)),
    )(x2, a_proj, wp_b, base, mask_bias,
      g1, b1, wqkv, bqkv, g2, b2, w1, bm1, w2, bm2,
      hg, hb, wh_b, bh)

    # cut the per-batch (S, S) attention blocks back out (module's layout)
    att_list = []
    for li in range(L):
        att_list.append(jnp.stack(
            [attn_full[li, :, b * S:(b + 1) * S, b * S:(b + 1) * S]
             for b in range(B)], axis=0))
    return logits, att_list


# --------------------------- pure-JAX reference -----------------------------
def ref_forward(x, params):
    H = params["num_heads"]
    wp, bp, cls, pos = params["patch"]
    B = x.shape[0]
    tok = jnp.concatenate(
        [jnp.broadcast_to(cls[None], (B, 1, cls.shape[-1])), x @ wp + bp[None]],
        axis=1) + pos[None]

    atts = []
    for (g1, b1, wq, bq, wk, bk, wv, bv, g2, b2, w1, bm1, w2, bm2) in params["layers"]:
        Bt, S, E = tok.shape
        hd = E // H
        z = _layernorm(tok, g1, b1)
        q = (z @ wq + bq).reshape(Bt, S, H, hd).transpose(0, 2, 1, 3)
        k = (z @ wk + bk).reshape(Bt, S, H, hd).transpose(0, 2, 1, 3)
        v = (z @ wv + bv).reshape(Bt, S, H, hd).transpose(0, 2, 1, 3)
        s = jnp.einsum("bhqd,bhkd->bhqk", q, k) / math.sqrt(E)
        p = jax.nn.softmax(s, axis=-1)
        o = jnp.einsum("bhqk,bhkd->bhqd", p, v).transpose(0, 2, 1, 3).reshape(Bt, S, E)
        tok = tok + o
        z = _layernorm(tok, g2, b2)
        tok = tok + (jax.nn.gelu(z @ w1 + bm1, approximate=False) @ w2 + bm2)
        atts.append(p)

    g, b, whd, bhd = params["head"]
    logits = _layernorm(tok[0], g, b) @ whd + bhd
    return logits, atts


# -------------------------------- parameters --------------------------------
def init_params(key, P, N, E, H, MH, L, C):
    ki = iter(jax.random.split(key, 8 + 16 * L))

    def rnd(shape, scale=0.02):
        return (scale * jax.random.normal(next(ki), shape)).astype(jnp.float32)

    params = {"num_heads": H}
    params["patch"] = (rnd((P, E)), rnd((1, E)),            # linear_proj W, b
                       rnd((1, E), 1.0),                    # class_token
                       rnd((N + 1, E), 1.0))                # pose_embedding
    layers = []
    for _ in range(L):
        layers.append((
            jnp.ones((1, E), jnp.float32), jnp.zeros((1, E), jnp.float32),   # ln1
            rnd((E, E)), rnd((1, E)),                                        # query
            rnd((E, E)), rnd((1, E)),                                        # key
            rnd((E, E)), rnd((1, E)),                                        # value
            jnp.ones((1, E), jnp.float32), jnp.zeros((1, E), jnp.float32),   # ln2
            rnd((E, MH)), rnd((1, MH)),                                      # mlp fc1
            rnd((MH, E)), rnd((1, E)),                                       # mlp fc2
        ))
    params["layers"] = layers
    params["head"] = (jnp.ones((1, E), jnp.float32), jnp.zeros((1, E), jnp.float32),
                      rnd((E, C)), rnd((1, C)))
    return params


# ----------------------------------- main -----------------------------------
if __name__ == "__main__":
    B, N, P = 2, 8, 48                 # batch, num_patches, patch_vec_size
    E, H, MH, L, C = 32, 4, 64, 2, 10  # embed, heads, mlp hidden, layers, classes

    key = jax.random.PRNGKey(0)
    kx, kp = jax.random.split(key)
    x = jax.random.normal(kx, (B, N, P), dtype=jnp.float32)
    params = init_params(kp, P, N, E, H, MH, L, C)

    logits, att_list = vit_forward(x, params)
    jax.block_until_ready((logits, att_list))

    assert logits.shape == (N + 1, C)
    assert all(a.shape == (B, H, N + 1, N + 1) for a in att_list)

    with jax.default_matmul_precision("highest"):
        ref_logits, ref_atts = ref_forward(x, params)
    # kernel runs MXU in bf16 (f32 accumulate) -> compare at bf16-level tolerance
    np.testing.assert_allclose(np.asarray(logits), np.asarray(ref_logits),
                               rtol=5e-2, atol=5e-3)
    for a, r in zip(att_list, ref_atts):
        np.testing.assert_allclose(np.asarray(a), np.asarray(r),
                                   rtol=5e-2, atol=2e-3)

    print("KERNEL_OK")
</pallas_src>

<mosaic_0001>
module attributes {stable_mosaic.version = 11 : i64} {
  func.func @kernel(%arg0: i32, %arg1: memref<16x48xf32, #tpu.memory_space<vmem>>, %arg2: memref<18x16xbf16, #tpu.memory_space<vmem>>, %arg3: memref<48x32xbf16, #tpu.memory_space<vmem>>, %arg4: memref<18x32xf32, #tpu.memory_space<vmem>>, %arg5: memref<18x18xf32, #tpu.memory_space<vmem>>, %arg6: memref<1x1x32xf32, #tpu.memory_space<vmem>>, %arg7: memref<1x1x32xf32, #tpu.memory_space<vmem>>, %arg8: memref<1x32x96xbf16, #tpu.memory_space<vmem>>, %arg9: memref<1x1x96xf32, #tpu.memory_space<vmem>>, %arg10: memref<1x1x32xf32, #tpu.memory_space<vmem>>, %arg11: memref<1x1x32xf32, #tpu.memory_space<vmem>>, %arg12: memref<1x32x64xbf16, #tpu.memory_space<vmem>>, %arg13: memref<1x1x64xf32, #tpu.memory_space<vmem>>, %arg14: memref<1x64x32xbf16, #tpu.memory_space<vmem>>, %arg15: memref<1x1x32xf32, #tpu.memory_space<vmem>>, %arg16: memref<1x32xf32, #tpu.memory_space<vmem>>, %arg17: memref<1x32xf32, #tpu.memory_space<vmem>>, %arg18: memref<32x10xbf16, #tpu.memory_space<vmem>>, %arg19: memref<1x10xf32, #tpu.memory_space<vmem>>, %arg20: memref<9x10xf32, #tpu.memory_space<vmem>>, %arg21: memref<1x4x18x18xf32, #tpu.memory_space<vmem>>, %arg22: memref<18x32xf32, #tpu.memory_space<vmem>>) attributes {dimension_semantics = [#tpu.dimension_semantics<arbitrary>], iteration_bounds = array<i64: 2>, scalar_prefetch = 0 : i64, scratch_operands = 1 : i64, tpu.core_type = #tpu.core_type<tc>, window_params = [{pipeline_mode = #tpu.pipeline_mode<synchronous>, transform_indices = @transform_0, window_bounds = array<i64: 16, 48>}, {pipeline_mode = #tpu.pipeline_mode<synchronous>, transform_indices = @transform_1, window_bounds = array<i64: 18, 16>}, {pipeline_mode = #tpu.pipeline_mode<synchronous>, transform_indices = @transform_2, window_bounds = array<i64: 48, 32>}, {pipeline_mode = #tpu.pipeline_mode<synchronous>, transform_indices = @transform_3, window_bounds = array<i64: 18, 32>}, {pipeline_mode = #tpu.pipeline_mode<synchronous>, transform_indices = @transform_4, window_bounds = array<i64: 18, 18>}, {transform_indices = @transform_5, window_bounds = array<i64: 1, 1, 32>}, {transform_indices = @transform_6, window_bounds = array<i64: 1, 1, 32>}, {transform_indices = @transform_7, window_bounds = array<i64: 1, 32, 96>}, {transform_indices = @transform_8, window_bounds = array<i64: 1, 1, 96>}, {transform_indices = @transform_9, window_bounds = array<i64: 1, 1, 32>}, {transform_indices = @transform_10, window_bounds = array<i64: 1, 1, 32>}, {transform_indices = @transform_11, window_bounds = array<i64: 1, 32, 64>}, {transform_indices = @transform_12, window_bounds = array<i64: 1, 1, 64>}, {transform_indices = @transform_13, window_bounds = array<i64: 1, 64, 32>}, {transform_indices = @transform_14, window_bounds = array<i64: 1, 1, 32>}, {pipeline_mode = #tpu.pipeline_mode<synchronous>, transform_indices = @transform_15, window_bounds = array<i64: 1, 32>}, {pipeline_mode = #tpu.pipeline_mode<synchronous>, transform_indices = @transform_16, window_bounds = array<i64: 1, 32>}, {pipeline_mode = #tpu.pipeline_mode<synchronous>, transform_indices = @transform_17, window_bounds = array<i64: 32, 10>}, {pipeline_mode = #tpu.pipeline_mode<synchronous>, transform_indices = @transform_18, window_bounds = array<i64: 1, 10>}, {pipeline_mode = #tpu.pipeline_mode<synchronous>, transform_indices = @transform_19, window_bounds = array<i64: 9, 10>}, {transform_indices = @transform_20, window_bounds = array<i64: 1, 4, 18, 18>}]} {
    %c0_i32 = arith.constant 0 : i32
    %0 = arith.cmpi eq, %arg0, %c0_i32 : i32
    %1 = arith.extui %0 : i1 to i32
    %c0_i32_0 = arith.constant 0 : i32
    %2 = arith.cmpi ne, %1, %c0_i32_0 : i32
    scf.if %2 {
      %c0_91 = arith.constant 0 : index
      %c0_92 = arith.constant 0 : index
      %249 = vector.load %arg1[%c0_91, %c0_92] : memref<16x48xf32, #tpu.memory_space<vmem>>, vector<16x48xf32>
      %250 = arith.truncf %249 : vector<16x48xf32> to vector<16x48xbf16>
      %c0_93 = arith.constant 0 : index
      %c0_94 = arith.constant 0 : index
      %251 = vector.load %arg3[%c0_93, %c0_94] : memref<48x32xbf16, #tpu.memory_space<vmem>>, vector<48x32xbf16>
      %cst_95 = arith.constant dense<0.000000e+00> : vector<16x32xf32>
      %252 = tpu.matmul %250, %251, %cst_95 {dimension_numbers = #tpu.dot_dimension_numbers<[1], [0], [0], [1], [0, 0, 1, 1], [], []>} : vector<16x48xbf16>, vector<48x32xbf16>, vector<16x32xf32> -> vector<16x32xf32>
      %c0_96 = arith.constant 0 : index
      %c0_97 = arith.constant 0 : index
      %253 = vector.load %arg2[%c0_96, %c0_97] : memref<18x16xbf16, #tpu.memory_space<vmem>>, vector<18x16xbf16>
      %254 = arith.truncf %252 : vector<16x32xf32> to vector<16x32xbf16>
      %cst_98 = arith.constant dense<0.000000e+00> : vector<18x32xf32>
      %255 = tpu.matmul %253, %254, %cst_98 {dimension_numbers = #tpu.dot_dimension_numbers<[1], [0], [0], [1], [0, 0, 1, 1], [], []>} : vector<18x16xbf16>, vector<16x32xbf16>, vector<18x32xf32> -> vector<18x32xf32>
      %c0_99 = arith.constant 0 : index
      %c0_100 = arith.constant 0 : index
      %256 = vector.load %arg4[%c0_99, %c0_100] : memref<18x32xf32, #tpu.memory_space<vmem>>, vector<18x32xf32>
      %257 = arith.addf %256, %255 : vector<18x32xf32>
      %c0_101 = arith.constant 0 : index
      %c0_102 = arith.constant 0 : index
      %258 = vector.load %arg22[%c0_101, %c0_102] : memref<18x32xf32, #tpu.memory_space<vmem>>, vector<18x32xf32>
      tpu.vector_store %arg22[%c0_101, %c0_102], %257 {strides = array<i32>} : memref<18x32xf32, #tpu.memory_space<vmem>>, vector<18x32xf32>,
    } else {
    }
    %c0 = arith.constant 0 : index
    %c0_1 = arith.constant 0 : index
    %3 = vector.load %arg22[%c0, %c0_1] : memref<18x32xf32, #tpu.memory_space<vmem>>, vector<18x32xf32>
    %c0_2 = arith.constant 0 : index
    %c0_3 = arith.constant 0 : index
    %c0_4 = arith.constant 0 : index
    %4 = vector.load %arg6[%c0_2, %c0_3, %c0_4] : memref<1x1x32xf32, #tpu.memory_space<vmem>>, vector<1x1x32xf32>
    %5 = vector.shape_cast %4 : vector<1x1x32xf32> to vector<1x32xf32>
    %c0_5 = arith.constant 0 : index
    %c0_6 = arith.constant 0 : index
    %c0_7 = arith.constant 0 : index
    %6 = vector.load %arg7[%c0_5, %c0_6, %c0_7] : memref<1x1x32xf32, #tpu.memory_space<vmem>>, vector<1x1x32xf32>
    %7 = vector.shape_cast %6 : vector<1x1x32xf32> to vector<1x32xf32>
    %cst = arith.constant dense<0.000000e+00> : vector<18xf32>
    %8 = vector.multi_reduction <add>, %3, %cst [1] : vector<18x32xf32> to vector<18xf32>
    %9 = vector.shape_cast %8 : vector<18xf32> to vector<18x1xf32>
    %cst_8 = arith.constant 3.200000e+01 : f32
    %10 = vector.broadcast %cst_8 : f32 to vector<18x1xf32>
    %11 = arith.divf %9, %10 : vector<18x1xf32>
    %12 = vector.broadcast %11 : vector<18x1xf32> to vector<18x32xf32>
    %13 = arith.subf %3, %12 : vector<18x32xf32>
    %14 = arith.mulf %13, %13 : vector<18x32xf32>
    %cst_9 = arith.constant dense<0.000000e+00> : vector<18xf32>
    %15 = vector.multi_reduction <add>, %14, %cst_9 [1] : vector<18x32xf32> to vector<18xf32>
    %16 = vector.shape_cast %15 : vector<18xf32> to vector<18x1xf32>
    %cst_10 = arith.constant 3.200000e+01 : f32
    %17 = vector.broadcast %cst_10 : f32 to vector<18x1xf32>
    %18 = arith.divf %16, %17 : vector<18x1xf32>
    %19 = vector.broadcast %11 : vector<18x1xf32> to vector<18x32xf32>
    %20 = arith.subf %3, %19 : vector<18x32xf32>
    %cst_11 = arith.constant 9.99999974E-6 : f32
    %21 = vector.broadcast %cst_11 : f32 to vector<18x1xf32>
    %22 = arith.addf %18, %21 : vector<18x1xf32>
    %23 = math.rsqrt %22 : vector<18x1xf32>
    %24 = vector.broadcast %23 : vector<18x1xf32> to vector<18x32xf32>
    %25 = arith.mulf %20, %24 : vector<18x32xf32>
    %26 = vector.broadcast %5 : vector<1x32xf32> to vector<18x32xf32>
    %27 = arith.mulf %25, %26 : vector<18x32xf32>
    %28 = vector.broadcast %7 : vector<1x32xf32> to vector<18x32xf32>
    %29 = arith.addf %27, %28 : vector<18x32xf32>
    %30 = arith.truncf %29 : vector<18x32xf32> to vector<18x32xbf16>
    %c0_12 = arith.constant 0 : index
    %c0_13 = arith.constant 0 : index
    %c0_14 = arith.constant 0 : index
    %31 = vector.load %arg8[%c0_12, %c0_13, %c0_14] : memref<1x32x96xbf16, #tpu.memory_space<vmem>>, vector<1x32x96xbf16>
    %32 = vector.shape_cast %31 : vector<1x32x96xbf16> to vector<32x96xbf16>
    %cst_15 = arith.constant dense<0.000000e+00> : vector<18x96xf32>
    %33 = tpu.matmul %30, %32, %cst_15 {dimension_numbers = #tpu.dot_dimension_numbers<[1], [0], [0], [1], [0, 0, 1, 1], [], []>} : vector<18x32xbf16>, vector<32x96xbf16>, vector<18x96xf32> -> vector<18x96xf32>
    %c0_16 = arith.constant 0 : index
    %c0_17 = arith.constant 0 : index
    %c0_18 = arith.constant 0 : index
    %34 = vector.load %arg9[%c0_16, %c0_17, %c0_18] : memref<1x1x96xf32, #tpu.memory_space<vmem>>, vector<1x1x96xf32>
    %35 = vector.shape_cast %34 : vector<1x1x96xf32> to vector<1x96xf32>
    %36 = vector.broadcast %35 : vector<1x96xf32> to vector<18x96xf32>
    %37 = arith.addf %33, %36 : vector<18x96xf32>
    %38 = vector.extract_strided_slice %37 {offsets = [0, 0], sizes = [18, 32], strides = [1, 1]} : vector<18x96xf32> to vector<18x32xf32>
    %39 = vector.extract_strided_slice %37 {offsets = [0, 32], sizes = [18, 32], strides = [1, 1]} : vector<18x96xf32> to vector<18x32xf32>
    %40 = vector.extract_strided_slice %37 {offsets = [0, 64], sizes = [18, 32], strides = [1, 1]} : vector<18x96xf32> to vector<18x32xf32>
    %c0_19 = arith.constant 0 : index
    %c0_20 = arith.constant 0 : index
    %41 = vector.load %arg5[%c0_19, %c0_20] : memref<18x18xf32, #tpu.memory_space<vmem>>, vector<18x18xf32>
    %42 = tpu.iota {dimensions = array<i32: 1>} : vector<1x32xi32>
    %cst_21 = arith.constant 0.000000e+00 : f32
    %43 = vector.broadcast %cst_21 : f32 to vector<18x32xf32>
    %c0_i32_22 = arith.constant 0 : i32
    %44 = vector.broadcast %c0_i32_22 : i32 to vector<1x32xi32>
    %45 = arith.cmpi sge, %42, %44 : vector<1x32xi32>
    %c8_i32 = arith.constant 8 : i32
    %46 = vector.broadcast %c8_i32 : i32 to vector<1x32xi32>
    %47 = arith.cmpi slt, %42, %46 : vector<1x32xi32>
    %48 = arith.andi %45, %47 : vector<1x32xi1>
    %49 = arith.extui %48 : vector<1x32xi1> to vector<1x32xi32>
    %50 = arith.sitofp %49 : vector<1x32xi32> to vector<1x32xf32>
    %51 = vector.broadcast %50 : vector<1x32xf32> to vector<18x32xf32>
    %52 = arith.mulf %38, %51 : vector<18x32xf32>
    %53 = arith.truncf %52 : vector<18x32xf32> to vector<18x32xbf16>
    %54 = vector.broadcast %50 : vector<1x32xf32> to vector<18x32xf32>
    %55 = arith.mulf %39, %54 : vector<18x32xf32>
    %56 = arith.truncf %55 : vector<18x32xf32> to vector<18x32xbf16>
    %57 = vector.broadcast %50 : vector<1x32xf32> to vector<18x32xf32>
    %58 = arith.mulf %40, %57 : vector<18x32xf32>
    %59 = arith.truncf %58 : vector<18x32xf32> to vector<18x32xbf16>
    %cst_23 = arith.constant dense<0.000000e+00> : vector<18x18xf32>
    %60 = tpu.matmul %53, %56, %cst_23 {dimension_numbers = #tpu.dot_dimension_numbers<[1], [1], [0], [0], [0, 0, 1, 0], [], []>} : vector<18x32xbf16>, vector<18x32xbf16>, vector<18x18xf32> -> vector<18x18xf32>
    %cst_24 = arith.constant 0.176776692 : f32
    %61 = vector.broadcast %cst_24 : f32 to vector<18x18xf32>
    %62 = arith.mulf %60, %61 : vector<18x18xf32>
    %63 = arith.addf %62, %41 : vector<18x18xf32>
    %cst_25 = arith.constant dense<0xFF800000> : vector<18xf32>
    %64 = vector.multi_reduction <maximumf>, %63, %cst_25 [1] : vector<18x18xf32> to vector<18xf32>
    %65 = vector.shape_cast %64 : vector<18xf32> to vector<18x1xf32>
    %66 = vector.broadcast %65 : vector<18x1xf32> to vector<18x18xf32>
    %67 = arith.subf %63, %66 : vector<18x18xf32>
    %68 = math.exp %67 : vector<18x18xf32>
    %cst_26 = arith.constant dense<0.000000e+00> : vector<18xf32>
    %69 = vector.multi_reduction <add>, %68, %cst_26 [1] : vector<18x18xf32> to vector<18xf32>
    %70 = vector.shape_cast %69 : vector<18xf32> to vector<18x1xf32>
    %71 = tpu.reciprocal %70 {approx = true} : vector<18x1xf32> -> vector<18x1xf32>
    %72 = vector.broadcast %71 : vector<18x1xf32> to vector<18x18xf32>
    %73 = arith.mulf %68, %72 : vector<18x18xf32>
    %c0_27 = arith.constant 0 : index
    %c0_28 = arith.constant 0 : index
    %c0_29 = arith.constant 0 : index
    %c0_30 = arith.constant 0 : index
    %74 = vector.load %arg21[%c0_27, %c0_28, %c0_29, %c0_30] : memref<1x4x18x18xf32, #tpu.memory_space<vmem>>, vector<1x1x18x18xf32>
    %75 = vector.shape_cast %74 : vector<1x1x18x18xf32> to vector<18x18xf32>
    %76 = vector.shape_cast %73 : vector<18x18xf32> to vector<1x1x18x18xf32>
    tpu.vector_store %arg21[%c0_27, %c0_28, %c0_29, %c0_30], %76 {strides = array<i32>} : memref<1x4x18x18xf32, #tpu.memory_space<vmem>>, vector<1x1x18x18xf32>,
    %77 = arith.truncf %73 : vector<18x18xf32> to vector<18x18xbf16>
    %cst_31 = arith.constant dense<0.000000e+00> : vector<18x32xf32>
    %78 = tpu.matmul %77, %59, %cst_31 {dimension_numbers = #tpu.dot_dimension_numbers<[1], [0], [0], [1], [0, 0, 1, 1], [], []>} : vector<18x18xbf16>, vector<18x32xbf16>, vector<18x32xf32> -> vector<18x32xf32>
    %79 = arith.addf %43, %78 : vector<18x32xf32>
    %c8_i32_32 = arith.constant 8 : i32
    %80 = vector.broadcast %c8_i32_32 : i32 to vector<1x32xi32>
    %81 = arith.cmpi sge, %42, %80 : vector<1x32xi32>
    %c16_i32 = arith.constant 16 : i32
    %82 = vector.broadcast %c16_i32 : i32 to vector<1x32xi32>
    %83 = arith.cmpi slt, %42, %82 : vector<1x32xi32>
    %84 = arith.andi %81, %83 : vector<1x32xi1>
    %85 = arith.extui %84 : vector<1x32xi1> to vector<1x32xi32>
    %86 = arith.sitofp %85 : vector<1x32xi32> to vector<1x32xf32>
    %87 = vector.broadcast %86 : vector<1x32xf32> to vector<18x32xf32>
    %88 = arith.mulf %38, %87 : vector<18x32xf32>
    %89 = arith.truncf %88 : vector<18x32xf32> to vector<18x32xbf16>
    %90 = vector.broadcast %86 : vector<1x32xf32> to vector<18x32xf32>
    %91 = arith.mulf %39, %90 : vector<18x32xf32>
    %92 = arith.truncf %91 : vector<18x32xf32> to vector<18x32xbf16>
    %93 = vector.broadcast %86 : vector<1x32xf32> to vector<18x32xf32>
    %94 = arith.mulf %40, %93 : vector<18x32xf32>
    %95 = arith.truncf %94 : vector<18x32xf32> to vector<18x32xbf16>
    %cst_33 = arith.constant dense<0.000000e+00> : vector<18x18xf32>
    %96 = tpu.matmul %89, %92, %cst_33 {dimension_numbers = #tpu.dot_dimension_numbers<[1], [1], [0], [0], [0, 0, 1, 0], [], []>} : vector<18x32xbf16>, vector<18x32xbf16>, vector<18x18xf32> -> vector<18x18xf32>
    %cst_34 = arith.constant 0.176776692 : f32
    %97 = vector.broadcast %cst_34 : f32 to vector<18x18xf32>
    %98 = arith.mulf %96, %97 : vector<18x18xf32>
    %99 = arith.addf %98, %41 : vector<18x18xf32>
    %cst_35 = arith.constant dense<0xFF800000> : vector<18xf32>
    %100 = vector.multi_reduction <maximumf>, %99, %cst_35 [1] : vector<18x18xf32> to vector<18xf32>
    %101 = vector.shape_cast %100 : vector<18xf32> to vector<18x1xf32>
    %102 = vector.broadcast %101 : vector<18x1xf32> to vector<18x18xf32>
    %103 = arith.subf %99, %102 : vector<18x18xf32>
    %104 = math.exp %103 : vector<18x18xf32>
    %cst_36 = arith.constant dense<0.000000e+00> : vector<18xf32>
    %105 = vector.multi_reduction <add>, %104, %cst_36 [1] : vector<18x18xf32> to vector<18xf32>
    %106 = vector.shape_cast %105 : vector<18xf32> to vector<18x1xf32>
    %107 = tpu.reciprocal %106 {approx = true} : vector<18x1xf32> -> vector<18x1xf32>
    %108 = vector.broadcast %107 : vector<18x1xf32> to vector<18x18xf32>
    %109 = arith.mulf %104, %108 : vector<18x18xf32>
    %c0_37 = arith.constant 0 : index
    %c1 = arith.constant 1 : index
    %c0_38 = arith.constant 0 : index
    %c0_39 = arith.constant 0 : index
    %110 = vector.load %arg21[%c0_37, %c1, %c0_38, %c0_39] : memref<1x4x18x18xf32, #tpu.memory_space<vmem>>, vector<1x1x18x18xf32>
    %111 = vector.shape_cast %110 : vector<1x1x18x18xf32> to vector<18x18xf32>
    %112 = vector.shape_cast %109 : vector<18x18xf32> to vector<1x1x18x18xf32>
    tpu.vector_store %arg21[%c0_37, %c1, %c0_38, %c0_39], %112 {strides = array<i32>} : memref<1x4x18x18xf32, #tpu.memory_space<vmem>>, vector<1x1x18x18xf32>,
    %113 = arith.truncf %109 : vector<18x18xf32> to vector<18x18xbf16>
    %cst_40 = arith.constant dense<0.000000e+00> : vector<18x32xf32>
    %114 = tpu.matmul %113, %95, %cst_40 {dimension_numbers = #tpu.dot_dimension_numbers<[1], [0], [0], [1], [0, 0, 1, 1], [], []>} : vector<18x18xbf16>, vector<18x32xbf16>, vector<18x32xf32> -> vector<18x32xf32>
    %115 = arith.addf %79, %114 : vector<18x32xf32>
    %c16_i32_41 = arith.constant 16 : i32
    %116 = vector.broadcast %c16_i32_41 : i32 to vector<1x32xi32>
    %117 = arith.cmpi sge, %42, %116 : vector<1x32xi32>
    %c24_i32 = arith.constant 24 : i32
    %118 = vector.broadcast %c24_i32 : i32 to vector<1x32xi32>
    %119 = arith.cmpi slt, %42, %118 : vector<1x32xi32>
    %120 = arith.andi %117, %119 : vector<1x32xi1>
    %121 = arith.extui %120 : vector<1x32xi1> to vector<1x32xi32>
    %122 = arith.sitofp %121 : vector<1x32xi32> to vector<1x32xf32>
    %123 = vector.broadcast %122 : vector<1x32xf32> to vector<18x32xf32>
    %124 = arith.mulf %38, %123 : vector<18x32xf32>
    %125 = arith.truncf %124 : vector<18x32xf32> to vector<18x32xbf16>
    %126 = vector.broadcast %122 : vector<1x32xf32> to vector<18x32xf32>
    %127 = arith.mulf %39, %126 : vector<18x32xf32>
    %128 = arith.truncf %127 : vector<18x32xf32> to vector<18x32xbf16>
    %129 = vector.broadcast %122 : vector<1x32xf32> to vector<18x32xf32>
    %130 = arith.mulf %40, %129 : vector<18x32xf32>
    %131 = arith.truncf %130 : vector<18x32xf32> to vector<18x32xbf16>
    %cst_42 = arith.constant dense<0.000000e+00> : vector<18x18xf32>
    %132 = tpu.matmul %125, %128, %cst_42 {dimension_numbers = #tpu.dot_dimension_numbers<[1], [1], [0], [0], [0, 0, 1, 0], [], []>} : vector<18x32xbf16>, vector<18x32xbf16>, vector<18x18xf32> -> vector<18x18xf32>
    %cst_43 = arith.constant 0.176776692 : f32
    %133 = vector.broadcast %cst_43 : f32 to vector<18x18xf32>
    %134 = arith.mulf %132, %133 : vector<18x18xf32>
    %135 = arith.addf %134, %41 : vector<18x18xf32>
    %cst_44 = arith.constant dense<0xFF800000> : vector<18xf32>
    %136 = vector.multi_reduction <maximumf>, %135, %cst_44 [1] : vector<18x18xf32> to vector<18xf32>
    %137 = vector.shape_cast %136 : vector<18xf32> to vector<18x1xf32>
    %138 = vector.broadcast %137 : vector<18x1xf32> to vector<18x18xf32>
    %139 = arith.subf %135, %138 : vector<18x18xf32>
    %140 = math.exp %139 : vector<18x18xf32>
    %cst_45 = arith.constant dense<0.000000e+00> : vector<18xf32>
    %141 = vector.multi_reduction <add>, %140, %cst_45 [1] : vector<18x18xf32> to vector<18xf32>
    %142 = vector.shape_cast %141 : vector<18xf32> to vector<18x1xf32>
    %143 = tpu.reciprocal %142 {approx = true} : vector<18x1xf32> -> vector<18x1xf32>
    %144 = vector.broadcast %143 : vector<18x1xf32> to vector<18x18xf32>
    %145 = arith.mulf %140, %144 : vector<18x18xf32>
    %c0_46 = arith.constant 0 : index
    %c2 = arith.constant 2 : index
    %c0_47 = arith.constant 0 : index
    %c0_48 = arith.constant 0 : index
    %146 = vector.load %arg21[%c0_46, %c2, %c0_47, %c0_48] : memref<1x4x18x18xf32, #tpu.memory_space<vmem>>, vector<1x1x18x18xf32>
    %147 = vector.shape_cast %146 : vector<1x1x18x18xf32> to vector<18x18xf32>
    %148 = vector.shape_cast %145 : vector<18x18xf32> to vector<1x1x18x18xf32>
    tpu.vector_store %arg21[%c0_46, %c2, %c0_47, %c0_48], %148 {strides = array<i32>} : memref<1x4x18x18xf32, #tpu.memory_space<vmem>>, vector<1x1x18x18xf32>,
    %149 = arith.truncf %145 : vector<18x18xf32> to vector<18x18xbf16>
    %cst_49 = arith.constant dense<0.000000e+00> : vector<18x32xf32>
    %150 = tpu.matmul %149, %131, %cst_49 {dimension_numbers = #tpu.dot_dimension_numbers<[1], [0], [0], [1], [0, 0, 1, 1], [], []>} : vector<18x18xbf16>, vector<18x32xbf16>, vector<18x32xf32> -> vector<18x32xf32>
    %151 = arith.addf %115, %150 : vector<18x32xf32>
    %c24_i32_50 = arith.constant 24 : i32
    %152 = vector.broadcast %c24_i32_50 : i32 to vector<1x32xi32>
    %153 = arith.cmpi sge, %42, %152 : vector<1x32xi32>
    %c32_i32 = arith.constant 32 : i32
    %154 = vector.broadcast %c32_i32 : i32 to vector<1x32xi32>
    %155 = arith.cmpi slt, %42, %154 : vector<1x32xi32>
    %156 = arith.andi %153, %155 : vector<1x32xi1>
    %157 = arith.extui %156 : vector<1x32xi1> to vector<1x32xi32>
    %158 = arith.sitofp %157 : vector<1x32xi32> to vector<1x32xf32>
    %159 = vector.broadcast %158 : vector<1x32xf32> to vector<18x32xf32>
    %160 = arith.mulf %38, %159 : vector<18x32xf32>
    %161 = arith.truncf %160 : vector<18x32xf32> to vector<18x32xbf16>
    %162 = vector.broadcast %158 : vector<1x32xf32> to vector<18x32xf32>
    %163 = arith.mulf %39, %162 : vector<18x32xf32>
    %164 = arith.truncf %163 : vector<18x32xf32> to vector<18x32xbf16>
    %165 = vector.broadcast %158 : vector<1x32xf32> to vector<18x32xf32>
    %166 = arith.mulf %40, %165 : vector<18x32xf32>
    %167 = arith.truncf %166 : vector<18x32xf32> to vector<18x32xbf16>
    %cst_51 = arith.constant dense<0.000000e+00> : vector<18x18xf32>
    %168 = tpu.matmul %161, %164, %cst_51 {dimension_numbers = #tpu.dot_dimension_numbers<[1], [1], [0], [0], [0, 0, 1, 0], [], []>} : vector<18x32xbf16>, vector<18x32xbf16>, vector<18x18xf32> -> vector<18x18xf32>
    %cst_52 = arith.constant 0.176776692 : f32
    %169 = vector.broadcast %cst_52 : f32 to vector<18x18xf32>
    %170 = arith.mulf %168, %169 : vector<18x18xf32>
    %171 = arith.addf %170, %41 : vector<18x18xf32>
    %cst_53 = arith.constant dense<0xFF800000> : vector<18xf32>
    %172 = vector.multi_reduction <maximumf>, %171, %cst_53 [1] : vector<18x18xf32> to vector<18xf32>
    %173 = vector.shape_cast %172 : vector<18xf32> to vector<18x1xf32>
    %174 = vector.broadcast %173 : vector<18x1xf32> to vector<18x18xf32>
    %175 = arith.subf %171, %174 : vector<18x18xf32>
    %176 = math.exp %175 : vector<18x18xf32>
    %cst_54 = arith.constant dense<0.000000e+00> : vector<18xf32>
    %177 = vector.multi_reduction <add>, %176, %cst_54 [1] : vector<18x18xf32> to vector<18xf32>
    %178 = vector.shape_cast %177 : vector<18xf32> to vector<18x1xf32>
    %179 = tpu.reciprocal %178 {approx = true} : vector<18x1xf32> -> vector<18x1xf32>
    %180 = vector.broadcast %179 : vector<18x1xf32> to vector<18x18xf32>
    %181 = arith.mulf %176, %180 : vector<18x18xf32>
    %c0_55 = arith.constant 0 : index
    %c3 = arith.constant 3 : index
    %c0_56 = arith.constant 0 : index
    %c0_57 = arith.constant 0 : index
    %182 = vector.load %arg21[%c0_55, %c3, %c0_56, %c0_57] : memref<1x4x18x18xf32, #tpu.memory_space<vmem>>, vector<1x1x18x18xf32>
    %183 = vector.shape_cast %182 : vector<1x1x18x18xf32> to vector<18x18xf32>
    %184 = vector.shape_cast %181 : vector<18x18xf32> to vector<1x1x18x18xf32>
    tpu.vector_store %arg21[%c0_55, %c3, %c0_56, %c0_57], %184 {strides = array<i32>} : memref<1x4x18x18xf32, #tpu.memory_space<vmem>>, vector<1x1x18x18xf32>,
    %185 = arith.truncf %181 : vector<18x18xf32> to vector<18x18xbf16>
    %cst_58 = arith.constant dense<0.000000e+00> : vector<18x32xf32>
    %186 = tpu.matmul %185, %167, %cst_58 {dimension_numbers = #tpu.dot_dimension_numbers<[1], [0], [0], [1], [0, 0, 1, 1], [], []>} : vector<18x18xbf16>, vector<18x32xbf16>, vector<18x32xf32> -> vector<18x32xf32>
    %187 = arith.addf %151, %186 : vector<18x32xf32>
    %188 = arith.addf %3, %187 : vector<18x32xf32>
    %c0_59 = arith.constant 0 : index
    %c0_60 = arith.constant 0 : index
    %c0_61 = arith.constant 0 : index
    %189 = vector.load %arg10[%c0_59, %c0_60, %c0_61] : memref<1x1x32xf32, #tpu.memory_space<vmem>>, vector<1x1x32xf32>
    %190 = vector.shape_cast %189 : vector<1x1x32xf32> to vector<1x32xf32>
    %c0_62 = arith.constant 0 : index
    %c0_63 = arith.constant 0 : index
    %c0_64 = arith.constant 0 : index
    %191 = vector.load %arg11[%c0_62, %c0_63, %c0_64] : memref<1x1x32xf32, #tpu.memory_space<vmem>>, vector<1x1x32xf32>
    %192 = vector.shape_cast %191 : vector<1x1x32xf32> to vector<1x32xf32>
    %cst_65 = arith.constant dense<0.000000e+00> : vector<18xf32>
    %193 = vector.multi_reduction <add>, %188, %cst_65 [1] : vector<18x32xf32> to vector<18xf32>
    %194 = vector.shape_cast %193 : vector<18xf32> to vector<18x1xf32>
    %cst_66 = arith.constant 3.200000e+01 : f32
    %195 = vector.broadcast %cst_66 : f32 to vector<18x1xf32>
    %196 = arith.divf %194, %195 : vector<18x1xf32>
    %197 = vector.broadcast %196 : vector<18x1xf32> to vector<18x32xf32>
    %198 = arith.subf %188, %197 : vector<18x32xf32>
    %199 = arith.mulf %198, %198 : vector<18x32xf32>
    %cst_67 = arith.constant dense<0.000000e+00> : vector<18xf32>
    %200 = vector.multi_reduction <add>, %199, %cst_67 [1] : vector<18x32xf32> to vector<18xf32>
    %201 = vector.shape_cast %200 : vector<18xf32> to vector<18x1xf32>
    %cst_68 = arith.constant 3.200000e+01 : f32
    %202 = vector.broadcast %cst_68 : f32 to vector<18x1xf32>
    %203 = arith.divf %201, %202 : vector<18x1xf32>
    %204 = vector.broadcast %196 : vector<18x1xf32> to vector<18x32xf32>
    %205 = arith.subf %188, %204 : vector<18x32xf32>
    %cst_69 = arith.constant 9.99999974E-6 : f32
    %206 = vector.broadcast %cst_69 : f32 to vector<18x1xf32>
    %207 = arith.addf %203, %206 : vector<18x1xf32>
    %208 = math.rsqrt %207 : vector<18x1xf32>
    %209 = vector.broadcast %208 : vector<18x1xf32> to vector<18x32xf32>
    %210 = arith.mulf %205, %209 : vector<18x32xf32>
    %211 = vector.broadcast %190 : vector<1x32xf32> to vector<18x32xf32>
    %212 = arith.mulf %210, %211 : vector<18x32xf32>
    %213 = vector.broadcast %192 : vector<1x32xf32> to vector<18x32xf32>
    %214 = arith.addf %212, %213 : vector<18x32xf32>
    %215 = arith.truncf %214 : vector<18x32xf32> to vector<18x32xbf16>
    %c0_70 = arith.constant 0 : index
    %c0_71 = arith.constant 0 : index
    %c0_72 = arith.constant 0 : index
    %216 = vector.load %arg12[%c0_70, %c0_71, %c0_72] : memref<1x32x64xbf16, #tpu.memory_space<vmem>>, vector<1x32x64xbf16>
    %217 = vector.shape_cast %216 : vector<1x32x64xbf16> to vector<32x64xbf16>
    %cst_73 = arith.constant dense<0.000000e+00> : vector<18x64xf32>
    %218 = tpu.matmul %215, %217, %cst_73 {dimension_numbers = #tpu.dot_dimension_numbers<[1], [0], [0], [1], [0, 0, 1, 1], [], []>} : vector<18x32xbf16>, vector<32x64xbf16>, vector<18x64xf32> -> vector<18x64xf32>
    %c0_74 = arith.constant 0 : index
    %c0_75 = arith.constant 0 : index
    %c0_76 = arith.constant 0 : index
    %219 = vector.load %arg13[%c0_74, %c0_75, %c0_76] : memref<1x1x64xf32, #tpu.memory_space<vmem>>, vector<1x1x64xf32>
    %220 = vector.shape_cast %219 : vector<1x1x64xf32> to vector<1x64xf32>
    %221 = vector.broadcast %220 : vector<1x64xf32> to vector<18x64xf32>
    %222 = arith.addf %218, %221 : vector<18x64xf32>
    %cst_77 = arith.constant 5.000000e-01 : f32
    %223 = vector.broadcast %cst_77 : f32 to vector<18x64xf32>
    %224 = arith.mulf %223, %222 : vector<18x64xf32>
    %cst_78 = arith.constant 4.471500e-02 : f32
    %225 = vector.broadcast %cst_78 : f32 to vector<18x64xf32>
    %226 = arith.mulf %225, %222 : vector<18x64xf32>
    %227 = arith.mulf %226, %222 : vector<18x64xf32>
    %228 = arith.mulf %227, %222 : vector<18x64xf32>
    %229 = arith.addf %222, %228 : vector<18x64xf32>
    %cst_79 = arith.constant 0.797884583 : f32
    %230 = vector.broadcast %cst_79 : f32 to vector<18x64xf32>
    %231 = arith.mulf %230, %229 : vector<18x64xf32>
    %232 = math.tanh %231 : vector<18x64xf32>
    %cst_80 = arith.constant 1.000000e+00 : f32
    %233 = vector.broadcast %cst_80 : f32 to vector<18x64xf32>
    %234 = arith.addf %233, %232 : vector<18x64xf32>
    %235 = arith.mulf %224, %234 : vector<18x64xf32>
    %236 = arith.truncf %235 : vector<18x64xf32> to vector<18x64xbf16>
    %c0_81 = arith.constant 0 : index
    %c0_82 = arith.constant 0 : index
    %c0_83 = arith.constant 0 : index
    %237 = vector.load %arg14[%c0_81, %c0_82, %c0_83] : memref<1x64x32xbf16, #tpu.memory_space<vmem>>, vector<1x64x32xbf16>
    %238 = vector.shape_cast %237 : vector<1x64x32xbf16> to vector<64x32xbf16>
    %cst_84 = arith.constant dense<0.000000e+00> : vector<18x32xf32>
    %239 = tpu.matmul %236, %238, %cst_84 {dimension_numbers = #tpu.dot_dimension_numbers<[1], [0], [0], [1], [0, 0, 1, 1], [], []>} : vector<18x64xbf16>, vector<64x32xbf16>, vector<18x32xf32> -> vector<18x32xf32>
    %c0_85 = arith.constant 0 : index
    %c0_86 = arith.constant 0 : index
    %c0_87 = arith.constant 0 : index
    %240 = vector.load %arg15[%c0_85, %c0_86, %c0_87] : memref<1x1x32xf32, #tpu.memory_space<vmem>>, vector<1x1x32xf32>
    %241 = vector.shape_cast %240 : vector<1x1x32xf32> to vector<1x32xf32>
    %242 = vector.broadcast %241 : vector<1x32xf32> to vector<18x32xf32>
    %243 = arith.addf %239, %242 : vector<18x32xf32>
    %244 = arith.addf %188, %243 : vector<18x32xf32>
    %c0_88 = arith.constant 0 : index
    %c0_89 = arith.constant 0 : index
    %245 = vector.load %arg22[%c0_88, %c0_89] : memref<18x32xf32, #tpu.memory_space<vmem>>, vector<18x32xf32>
    tpu.vector_store %arg22[%c0_88, %c0_89], %244 {strides = array<i32>} : memref<18x32xf32, #tpu.memory_space<vmem>>, vector<18x32xf32>,
    %c1_i32 = arith.constant 1 : i32
    %246 = arith.cmpi eq, %arg0, %c1_i32 : i32
    %247 = arith.extui %246 : i1 to i32
    %c0_i32_90 = arith.constant 0 : i32
    %248 = arith.cmpi ne, %247, %c0_i32_90 : i32
    scf.if %248 {
      %249 = vector.extract_strided_slice %244 {offsets = [0, 0], sizes = [9, 32], strides = [1, 1]} : vector<18x32xf32> to vector<9x32xf32>
      %c0_91 = arith.constant 0 : index
      %c0_92 = arith.constant 0 : index
      %250 = vector.load %arg16[%c0_91, %c0_92] : memref<1x32xf32, #tpu.memory_space<vmem>>, vector<1x32xf32>
      %c0_93 = arith.constant 0 : index
      %c0_94 = arith.constant 0 : index
      %251 = vector.load %arg17[%c0_93, %c0_94] : memref<1x32xf32, #tpu.memory_space<vmem>>, vector<1x32xf32>
      %cst_95 = arith.constant dense<0.000000e+00> : vector<9xf32>
      %252 = vector.multi_reduction <add>, %249, %cst_95 [1] : vector<9x32xf32> to vector<9xf32>
      %253 = vector.shape_cast %252 : vector<9xf32> to vector<9x1xf32>
      %cst_96 = arith.constant 3.200000e+01 : f32
      %254 = vector.broadcast %cst_96 : f32 to vector<9x1xf32>
      %255 = arith.divf %253, %254 : vector<9x1xf32>
      %256 = vector.broadcast %255 : vector<9x1xf32> to vector<9x32xf32>
      %257 = arith.subf %249, %256 : vector<9x32xf32>
      %258 = arith.mulf %257, %257 : vector<9x32xf32>
      %cst_97 = arith.constant dense<0.000000e+00> : vector<9xf32>
      %259 = vector.multi_reduction <add>, %258, %cst_97 [1] : vector<9x32xf32> to vector<9xf32>
      %260 = vector.shape_cast %259 : vector<9xf32> to vector<9x1xf32>
      %cst_98 = arith.constant 3.200000e+01 : f32
      %261 = vector.broadcast %cst_98 : f32 to vector<9x1xf32>
      %262 = arith.divf %260, %261 : vector<9x1xf32>
      %263 = vector.broadcast %255 : vector<9x1xf32> to vector<9x32xf32>
      %264 = arith.subf %249, %263 : vector<9x32xf32>
      %cst_99 = arith.constant 9.99999974E-6 : f32
      %265 = vector.broadcast %cst_99 : f32 to vector<9x1xf32>
      %266 = arith.addf %262, %265 : vector<9x1xf32>
      %267 = math.rsqrt %266 : vector<9x1xf32>
      %268 = vector.broadcast %267 : vector<9x1xf32> to vector<9x32xf32>
      %269 = arith.mulf %264, %268 : vector<9x32xf32>
      %270 = vector.broadcast %250 : vector<1x32xf32> to vector<9x32xf32>
      %271 = arith.mulf %269, %270 : vector<9x32xf32>
      %272 = vector.broadcast %251 : vector<1x32xf32> to vector<9x32xf32>
      %273 = arith.addf %271, %272 : vector<9x32xf32>
      %274 = arith.truncf %273 : vector<9x32xf32> to vector<9x32xbf16>
      %c0_100 = arith.constant 0 : index
      %c0_101 = arith.constant 0 : index
      %275 = vector.load %arg18[%c0_100, %c0_101] : memref<32x10xbf16, #tpu.memory_space<vmem>>, vector<32x10xbf16>
      %cst_102 = arith.constant dense<0.000000e+00> : vector<9x10xf32>
      %276 = tpu.matmul %274, %275, %cst_102 {dimension_numbers = #tpu.dot_dimension_numbers<[1], [0], [0], [1], [0, 0, 1, 1], [], []>} : vector<9x32xbf16>, vector<32x10xbf16>, vector<9x10xf32> -> vector<9x10xf32>
      %c0_103 = arith.constant 0 : index
      %c0_104 = arith.constant 0 : index
      %277 = vector.load %arg19[%c0_103, %c0_104] : memref<1x10xf32, #tpu.memory_space<vmem>>, vector<1x10xf32>
      %278 = vector.broadcast %277 : vector<1x10xf32> to vector<9x10xf32>
      %279 = arith.addf %276, %278 : vector<9x10xf32>
      %c0_105 = arith.constant 0 : index
      %c0_106 = arith.constant 0 : index
      %280 = vector.load %arg20[%c0_105, %c0_106] : memref<9x10xf32, #tpu.memory_space<vmem>>, vector<9x10xf32>
      tpu.vector_store %arg20[%c0_105, %c0_106], %279 {strides = array<i32>} : memref<9x10xf32, #tpu.memory_space<vmem>>, vector<9x10xf32>,
    } else {
    }
    return
  }
  func.func @transform_0(%arg0: i32) -> (i32, i32) {
    %c0_i32 = arith.constant 0 : i32
    %c0_i32_0 = arith.constant 0 : i32
    %c0_i32_1 = arith.constant 0 : i32
    return %c0_i32, %c0_i32_0 : i32, i32
  }
  func.func @transform_1(%arg0: i32) -> (i32, i32) {
    %c0_i32 = arith.constant 0 : i32
    %c0_i32_0 = arith.constant 0 : i32
    %c0_i32_1 = arith.constant 0 : i32
    return %c0_i32, %c0_i32_0 : i32, i32
  }
  func.func @transform_2(%arg0: i32) -> (i32, i32) {
    %c0_i32 = arith.constant 0 : i32
    %c0_i32_0 = arith.constant 0 : i32
    %c0_i32_1 = arith.constant 0 : i32
    return %c0_i32, %c0_i32_0 : i32, i32
  }
  func.func @transform_3(%arg0: i32) -> (i32, i32) {
    %c0_i32 = arith.constant 0 : i32
    %c0_i32_0 = arith.constant 0 : i32
    %c0_i32_1 = arith.constant 0 : i32
    return %c0_i32, %c0_i32_0 : i32, i32
  }
  func.func @transform_4(%arg0: i32) -> (i32, i32) {
    %c0_i32 = arith.constant 0 : i32
    %c0_i32_0 = arith.constant 0 : i32
    %c0_i32_1 = arith.constant 0 : i32
    return %c0_i32, %c0_i32_0 : i32, i32
  }
  func.func @transform_5(%arg0: i32) -> (i32, i32, i32) {
    %c0_i32 = arith.constant 0 : i32
    %c0_i32_0 = arith.constant 0 : i32
    %c0_i32_1 = arith.constant 0 : i32
    return %arg0, %c0_i32, %c0_i32_0 : i32, i32, i32
  }
  func.func @transform_6(%arg0: i32) -> (i32, i32, i32) {
    %c0_i32 = arith.constant 0 : i32
    %c0_i32_0 = arith.constant 0 : i32
    %c0_i32_1 = arith.constant 0 : i32
    return %arg0, %c0_i32, %c0_i32_0 : i32, i32, i32
  }
  func.func @transform_7(%arg0: i32) -> (i32, i32, i32) {
    %c0_i32 = arith.constant 0 : i32
    %c0_i32_0 = arith.constant 0 : i32
    %c0_i32_1 = arith.constant 0 : i32
    return %arg0, %c0_i32, %c0_i32_0 : i32, i32, i32
  }
  func.func @transform_8(%arg0: i32) -> (i32, i32, i32) {
    %c0_i32 = arith.constant 0 : i32
    %c0_i32_0 = arith.constant 0 : i32
    %c0_i32_1 = arith.constant 0 : i32
    return %arg0, %c0_i32, %c0_i32_0 : i32, i32, i32
  }
  func.func @transform_9(%arg0: i32) -> (i32, i32, i32) {
    %c0_i32 = arith.constant 0 : i32
    %c0_i32_0 = arith.constant 0 : i32
    %c0_i32_1 = arith.constant 0 : i32
    return %arg0, %c0_i32, %c0_i32_0 : i32, i32, i32
  }
  func.func @transform_10(%arg0: i32) -> (i32, i32, i32) {
    %c0_i32 = arith.constant 0 : i32
    %c0_i32_0 = arith.constant 0 : i32
    %c0_i32_1 = arith.constant 0 : i32
    return %arg0, %c0_i32, %c0_i32_0 : i32, i32, i32
  }
  func.func @transform_11(%arg0: i32) -> (i32, i32, i32) {
    %c0_i32 = arith.constant 0 : i32
    %c0_i32_0 = arith.constant 0 : i32
    %c0_i32_1 = arith.constant 0 : i32
    return %arg0, %c0_i32, %c0_i32_0 : i32, i32, i32
  }
  func.func @transform_12(%arg0: i32) -> (i32, i32, i32) {
    %c0_i32 = arith.constant 0 : i32
    %c0_i32_0 = arith.constant 0 : i32
    %c0_i32_1 = arith.constant 0 : i32
    return %arg0, %c0_i32, %c0_i32_0 : i32, i32, i32
  }
  func.func @transform_13(%arg0: i32) -> (i32, i32, i32) {
    %c0_i32 = arith.constant 0 : i32
    %c0_i32_0 = arith.constant 0 : i32
    %c0_i32_1 = arith.constant 0 : i32
    return %arg0, %c0_i32, %c0_i32_0 : i32, i32, i32
  }
  func.func @transform_14(%arg0: i32) -> (i32, i32, i32) {
    %c0_i32 = arith.constant 0 : i32
    %c0_i32_0 = arith.constant 0 : i32
    %c0_i32_1 = arith.constant 0 : i32
    return %arg0, %c0_i32, %c0_i32_0 : i32, i32, i32
  }
  func.func @transform_15(%arg0: i32) -> (i32, i32) {
    %c0_i32 = arith.constant 0 : i32
    %c0_i32_0 = arith.constant 0 : i32
    %c0_i32_1 = arith.constant 0 : i32
    return %c0_i32, %c0_i32_0 : i32, i32
  }
  func.func @transform_16(%arg0: i32) -> (i32, i32) {
    %c0_i32 = arith.constant 0 : i32
    %c0_i32_0 = arith.constant 0 : i32
    %c0_i32_1 = arith.constant 0 : i32
    return %c0_i32, %c0_i32_0 : i32, i32
  }
  func.func @transform_17(%arg0: i32) -> (i32, i32) {
    %c0_i32 = arith.constant 0 : i32
    %c0_i32_0 = arith.constant 0 : i32
    %c0_i32_1 = arith.constant 0 : i32
    return %c0_i32, %c0_i32_0 : i32, i32
  }
  func.func @transform_18(%arg0: i32) -> (i32, i32) {
    %c0_i32 = arith.constant 0 : i32
    %c0_i32_0 = arith.constant 0 : i32
    %c0_i32_1 = arith.constant 0 : i32
    return %c0_i32, %c0_i32_0 : i32, i32
  }
  func.func @transform_19(%arg0: i32) -> (i32, i32) {
    %c0_i32 = arith.constant 0 : i32
    %c0_i32_0 = arith.constant 0 : i32
    %c0_i32_1 = arith.constant 0 : i32
    return %c0_i32, %c0_i32_0 : i32, i32
  }
  func.func @transform_20(%arg0: i32) -> (i32, i32, i32, i32) {
    %c0_i32 = arith.constant 0 : i32
    %c0_i32_0 = arith.constant 0 : i32
    %c0_i32_1 = arith.constant 0 : i32
    %c0_i32_2 = arith.constant 0 : i32
    return %arg0, %c0_i32, %c0_i32_0, %c0_i32_1 : i32, i32, i32, i32
  }
}

</mosaic_0001>

<llo_original>
// kernel: tpu_custom_call.1
$region0: #{tpu_custom_call.1}
  #allocation0 [shape = 'u32[]', space=smem, size = 0x4, offset = 0x4, fixed_abs, tag = 'smem constant byte address 0x4 - core index']
  #allocation1 [shape = 'u32[72,128]{1,0:T(1,128)}', space=vmem, size = 0x9000, scoped, tag = 'internal scratch']
  #allocation2 [shape = 'f32[18,32]{1,0:T(8,128)}', space=vmem, size = 0x3000, scoped, tag = 'scratch operand']
  %s0 = inlined_call_operand.hbm [shape: f32[16,48], index: 0, kind: input, shape index: {}]
  %s1 = inlined_call_operand.vmem [shape: bf16[18,16], index: 1, kind: input, shape index: {}]
  %s2 = inlined_call_operand.vmem [shape: bf16[48,32], index: 2, kind: input, shape index: {}]
  %s3 = inlined_call_operand.vmem [shape: f32[18,32], index: 3, kind: input, shape index: {}]
  %s4 = inlined_call_operand.vmem [shape: f32[18,18], index: 4, kind: input, shape index: {}]
  %s5 = inlined_call_operand.vmem [shape: f32[2,1,32], index: 5, kind: input, shape index: {}]
  %s6 = inlined_call_operand.vmem [shape: f32[2,1,32], index: 6, kind: input, shape index: {}]
  %s7 = inlined_call_operand.vmem [shape: bf16[2,32,96], index: 7, kind: input, shape index: {}]
  %s8 = inlined_call_operand.vmem [shape: f32[2,1,96], index: 8, kind: input, shape index: {}]
  %s9 = inlined_call_operand.vmem [shape: f32[2,1,32], index: 9, kind: input, shape index: {}]
  %s10 = inlined_call_operand.vmem [shape: f32[2,1,32], index: 10, kind: input, shape index: {}]
  %s11 = inlined_call_operand.vmem [shape: bf16[2,32,64], index: 11, kind: input, shape index: {}]
  %s12 = inlined_call_operand.vmem [shape: f32[2,1,64], index: 12, kind: input, shape index: {}]
  %s13 = inlined_call_operand.vmem [shape: bf16[2,64,32], index: 13, kind: input, shape index: {}]
  %s14 = inlined_call_operand.vmem [shape: f32[2,1,32], index: 14, kind: input, shape index: {}]
  %s15 = inlined_call_operand.vmem [shape: f32[1,32], index: 15, kind: input, shape index: {}]
  %s16 = inlined_call_operand.vmem [shape: f32[1,32], index: 16, kind: input, shape index: {}]
  %s17 = inlined_call_operand.vmem [shape: bf16[32,10], index: 17, kind: input, shape index: {}]
  %s18 = inlined_call_operand.vmem [shape: f32[1,10], index: 18, kind: input, shape index: {}]
  %s19 = inlined_call_operand.hbm [shape: f32[9,10], index: 19, kind: output, shape index: {0}]
  %s20 = inlined_call_operand.vmem [shape: f32[2,4,18,18], index: 20, kind: output, shape index: {1}]
  %21 = xla_tuple %s19, %s20
  %s22 = sld [smem:[#allocation0]]
  $region129: #{tpu_custom_call.1} parent=0
    _
  %s24 = ssub.s32 1, %s22
  %s25 = scalar_select 0, %s24, %s22
  $region1: #{tpu_custom_call.1} parent=0
    #allocation3 [shape = 'u8[8192]{0}', space=vmem, size = 0x2000, scoped, tag = 'input window, operand 0, single buffered']
    #allocation4 [shape = 's32[2]{0}', space=sflag, size = 0x8, scoped, tag = 'scoped memory for tpu_custom_call.1']
    #allocation5 [shape = 's32[2]{0}', space=sflag, size = 0x8, scoped, tag = 'scoped memory for tpu_custom_call.1']
    #allocation6 [shape = 'u8[8192]{0}', space=vmem, size = 0x2000, scoped, tag = 'output window, operand 0, single buffered']
    %26 = vsyncpa [#allocation4], 0
    %27 = vsyncpa [#allocation5], 0
    loop: start=0, step=1, limit=4
    $region2: #{tpu_custom_call.1} parent=1 // loop_pre_header
      _
    $region3: #{tpu_custom_call.1} parent=1 // loop_header
      %s29 = sphi 0, %s33
      %p30 = scmp.ge.s32.totalorder %s29, 4
      %s37 = sphi 0, %s37
      %s39 = sphi 0, %s37
      %s40 = sphi 0, %s39
      %s54 = sphi 0, %s40
      %s58 = sphi 0, %s58
      %s60 = sphi 0, %s58
      %s61 = sphi 0, %s60
      %s75 = sphi 0, %s61
      %s79 = sphi 0, %s79
      %s81 = sphi 0, %s79
      %s82 = sphi 0, %s81
      %s96 = sphi 0, %s82
      %s100 = sphi 0, %s100
      %s102 = sphi 0, %s100
      %s103 = sphi 0, %s102
      %s117 = sphi 0, %s103
      %s121 = sphi 0, %s121
      %s123 = sphi 0, %s121
      %s124 = sphi 0, %s123
      %s138 = sphi 0, %s124
      %s144 = sphi 0, %s146
      %s147 = sphi 0, %s144
      %s148 = sphi 0, %s147
      %s164 = sphi 0, %s148
      %s170 = sphi 0, %s172
      %s173 = sphi 0, %s170
      %s174 = sphi 0, %s173
      %s190 = sphi 0, %s174
      %s196 = sphi 0, %s198
      %s199 = sphi 0, %s196
      %s200 = sphi 0, %s199
      %s216 = sphi 0, %s200
      %s222 = sphi 0, %s224
      %s225 = sphi 0, %s222
      %s226 = sphi 0, %s225
      %s242 = sphi 0, %s226
      %s248 = sphi 0, %s250
      %s251 = sphi 0, %s248
      %s252 = sphi 0, %s251
      %s268 = sphi 0, %s252
      %s274 = sphi 0, %s276
      %s277 = sphi 0, %s274
      %s278 = sphi 0, %s277
      %s294 = sphi 0, %s278
      %s300 = sphi 0, %s302
      %s303 = sphi 0, %s300
      %s304 = sphi 0, %s303
      %s320 = sphi 0, %s304
      %s326 = sphi 0, %s328
      %s329 = sphi 0, %s326
      %s330 = sphi 0, %s329
      %s346 = sphi 0, %s330
      %s352 = sphi 0, %s354
      %s355 = sphi 0, %s352
      %s356 = sphi 0, %s355
      %s372 = sphi 0, %s356
      %s378 = sphi 0, %s380
      %s381 = sphi 0, %s378
      %s382 = sphi 0, %s381
      %s398 = sphi 0, %s382
      %s402 = sphi 0, %s402
      %s404 = sphi 0, %s402
      %s405 = sphi 0, %s404
      %s419 = sphi 0, %s405
      %s423 = sphi 0, %s423
      %s425 = sphi 0, %s423
      %s426 = sphi 0, %s425
      %s440 = sphi 0, %s426
      %s444 = sphi 0, %s444
      %s446 = sphi 0, %s444
      %s447 = sphi 0, %s446
      %s461 = sphi 0, %s447
      %s465 = sphi 0, %s465
      %s467 = sphi 0, %s465
      %s468 = sphi 0, %s467
      %s482 = sphi 0, %s468
      %s486 = sphi 0, %s486
      %s488 = sphi 0, %s486
      %s489 = sphi 0, %s488
      %s503 = sphi 0, %s489
      %s509 = sphi 0, %s511
      %s512 = sphi 0, %s509
      %s513 = sphi 0, %s512
      %s529 = sphi 0, %s513
    $region4: #{tpu_custom_call.1} parent=1 // loop_header_branch
      %32 = sbr.rel (%p30) target = $region8
    $region5: #{tpu_custom_call.1} parent=1 // loop_body
      %s34 = ssub.s32 %s29, 1
      %s35 = ssub.s32 %s29, 2
      %s36 = sadd.s32 %s29, 1
      %s38 = sadd.s32 %s37, 1
      %p41 = scmp.eq.s32.totalorder %s29, 1
      %p42 = scmp.ne.s32.totalorder %s37, %s39
      %p43 = scmp.eq.s32.totalorder %s29, 0
      %p44 = por %p42, %p43
      %p45 = scmp.ne.s32.totalorder %s37, %s39
      %p46 = scmp.eq.s32.totalorder %s34, 1
      %p47 = por %p45, %p46
      %p48 = scmp.ne.s32.totalorder %s39, %s40
      %p49 = scmp.eq.s32.totalorder %s34, 0
      %p50 = por %p48, %p49
      %p51 = scmp.ne.s32.totalorder %s39, %s40
      %p52 = scmp.eq.s32.totalorder %s35, 1
      %p53 = por %p51, %p52
      %p55 = scmp.ne.s32.totalorder %s40, %s54
      %p56 = scmp.eq.s32.totalorder %s35, 0
      %p57 = por %p55, %p56
      %s59 = sadd.s32 %s58, 1
      %p62 = scmp.eq.s32.totalorder %s29, 1
      %p63 = scmp.ne.s32.totalorder %s58, %s60
      %p64 = scmp.eq.s32.totalorder %s29, 0
      %p65 = por %p63, %p64
      %p66 = scmp.ne.s32.totalorder %s58, %s60
      %p67 = scmp.eq.s32.totalorder %s34, 1
      %p68 = por %p66, %p67
      %p69 = scmp.ne.s32.totalorder %s60, %s61
      %p70 = scmp.eq.s32.totalorder %s34, 0
      %p71 = por %p69, %p70
      %p72 = scmp.ne.s32.totalorder %s60, %s61
      %p73 = scmp.eq.s32.totalorder %s35, 1
      %p74 = por %p72, %p73
      %p76 = scmp.ne.s32.totalorder %s61, %s75
      %p77 = scmp.eq.s32.totalorder %s35, 0
      %p78 = por %p76, %p77
      %s80 = sadd.s32 %s79, 1
      %p83 = scmp.eq.s32.totalorder %s29, 1
      %p84 = scmp.ne.s32.totalorder %s79, %s81
      %p85 = scmp.eq.s32.totalorder %s29, 0
      %p86 = por %p84, %p85
      %p87 = scmp.ne.s32.totalorder %s79, %s81
      %p88 = scmp.eq.s32.totalorder %s34, 1
      %p89 = por %p87, %p88
      %p90 = scmp.ne.s32.totalorder %s81, %s82
      %p91 = scmp.eq.s32.totalorder %s34, 0
      %p92 = por %p90, %p91
      %p93 = scmp.ne.s32.totalorder %s81, %s82
      %p94 = scmp.eq.s32.totalorder %s35, 1
      %p95 = por %p93, %p94
      %p97 = scmp.ne.s32.totalorder %s82, %s96
      %p98 = scmp.eq.s32.totalorder %s35, 0
      %p99 = por %p97, %p98
      %s101 = sadd.s32 %s100, 1
      %p104 = scmp.eq.s32.totalorder %s29, 1
      %p105 = scmp.ne.s32.totalorder %s100, %s102
      %p106 = scmp.eq.s32.totalorder %s29, 0
      %p107 = por %p105, %p106
      %p108 = scmp.ne.s32.totalorder %s100, %s102
      %p109 = scmp.eq.s32.totalorder %s34, 1
      %p110 = por %p108, %p109
      %p111 = scmp.ne.s32.totalorder %s102, %s103
      %p112 = scmp.eq.s32.totalorder %s34, 0
      %p113 = por %p111, %p112
      %p114 = scmp.ne.s32.totalorder %s102, %s103
      %p115 = scmp.eq.s32.totalorder %s35, 1
      %p116 = por %p114, %p115
      %p118 = scmp.ne.s32.totalorder %s103, %s117
      %p119 = scmp.eq.s32.totalorder %s35, 0
      %p120 = por %p118, %p119
      %s122 = sadd.s32 %s121, 1
      %p125 = scmp.eq.s32.totalorder %s29, 1
      %p126 = scmp.ne.s32.totalorder %s121, %s123
      %p127 = scmp.eq.s32.totalorder %s29, 0
      %p128 = por %p126, %p127
      %p129 = scmp.ne.s32.totalorder %s121, %s123
      %p130 = scmp.eq.s32.totalorder %s34, 1
      %p131 = por %p129, %p130
      %p132 = scmp.ne.s32.totalorder %s123, %s124
      %p133 = scmp.eq.s32.totalorder %s34, 0
      %p134 = por %p132, %p133
      %p135 = scmp.ne.s32.totalorder %s123, %s124
      %p136 = scmp.eq.s32.totalorder %s35, 1
      %p137 = por %p135, %p136
      %p139 = scmp.ne.s32.totalorder %s124, %s138
      %p140 = scmp.eq.s32.totalorder %s35, 0
      %p141 = por %p139, %p140
      %s142 = ssub.s32 %s29, %s36
      %p143 = scmp.eq.s32.totalorder %s142, 0
      %s145 = sadd.s32 %s144, 1
      %s146 = scalar_select %p143, %s144, %s145
      %p149 = pneg %p143
      %p150 = scmp.eq.s32.totalorder %s29, 1
      %p151 = por %p149, %p150
      %p152 = scmp.ne.s32.totalorder %s144, %s147
      %p153 = scmp.eq.s32.totalorder %s29, 0
      %p154 = por %p152, %p153
      %p155 = scmp.ne.s32.totalorder %s144, %s147
      %p156 = scmp.eq.s32.totalorder %s34, 1
      %p157 = por %p155, %p156
      %p158 = scmp.ne.s32.totalorder %s147, %s148
      %p159 = scmp.eq.s32.totalorder %s34, 0
      %p160 = por %p158, %p159
      %p161 = scmp.ne.s32.totalorder %s147, %s148
      %p162 = scmp.eq.s32.totalorder %s35, 1
      %p163 = por %p161, %p162
      %p165 = scmp.ne.s32.totalorder %s148, %s164
      %p166 = scmp.eq.s32.totalorder %s35, 0
      %p167 = por %p165, %p166
      %s168 = ssub.s32 %s29, %s36
      %p169 = scmp.eq.s32.totalorder %s168, 0
      %s171 = sadd.s32 %s170, 1
      %s172 = scalar_select %p169, %s170, %s171
      %p175 = pneg %p169
      %p176 = scmp.eq.s32.totalorder %s29, 1
      %p177 = por %p175, %p176
      %p178 = scmp.ne.s32.totalorder %s170, %s173
      %p179 = scmp.eq.s32.totalorder %s29, 0
      %p180 = por %p178, %p179
      %p181 = scmp.ne.s32.totalorder %s170, %s173
      %p182 = scmp.eq.s32.totalorder %s34, 1
      %p183 = por %p181, %p182
      %p184 = scmp.ne.s32.totalorder %s173, %s174
      %p185 = scmp.eq.s32.totalorder %s34, 0
      %p186 = por %p184, %p185
      %p187 = scmp.ne.s32.totalorder %s173, %s174
      %p188 = scmp.eq.s32.totalorder %s35, 1
      %p189 = por %p187, %p188
      %p191 = scmp.ne.s32.totalorder %s174, %s190
      %p192 = scmp.eq.s32.totalorder %s35, 0
      %p193 = por %p191, %p192
      %s194 = ssub.s32 %s29, %s36
      %p195 = scmp.eq.s32.totalorder %s194, 0
      %s197 = sadd.s32 %s196, 1
      %s198 = scalar_select %p195, %s196, %s197
      %p201 = pneg %p195
      %p202 = scmp.eq.s32.totalorder %s29, 1
      %p203 = por %p201, %p202
      %p204 = scmp.ne.s32.totalorder %s196, %s199
      %p205 = scmp.eq.s32.totalorder %s29, 0
      %p206 = por %p204, %p205
      %p207 = scmp.ne.s32.totalorder %s196, %s199
      %p208 = scmp.eq.s32.totalorder %s34, 1
      %p209 = por %p207, %p208
      %p210 = scmp.ne.s32.totalorder %s199, %s200
      %p211 = scmp.eq.s32.totalorder %s34, 0
      %p212 = por %p210, %p211
      %p213 = scmp.ne.s32.totalorder %s199, %s200
      %p214 = scmp.eq.s32.totalorder %s35, 1
      %p215 = por %p213, %p214
      %p217 = scmp.ne.s32.totalorder %s200, %s216
      %p218 = scmp.eq.s32.totalorder %s35, 0
      %p219 = por %p217, %p218
      %s220 = ssub.s32 %s29, %s36
      %p221 = scmp.eq.s32.totalorder %s220, 0
      %s223 = sadd.s32 %s222, 1
      %s224 = scalar_select %p221, %s222, %s223
      %p227 = pneg %p221
      %p228 = scmp.eq.s32.totalorder %s29, 1
      %p229 = por %p227, %p228
      %p230 = scmp.ne.s32.totalorder %s222, %s225
      %p231 = scmp.eq.s32.totalorder %s29, 0
      %p232 = por %p230, %p231
      %p233 = scmp.ne.s32.totalorder %s222, %s225
      %p234 = scmp.eq.s32.totalorder %s34, 1
      %p235 = por %p233, %p234
      %p236 = scmp.ne.s32.totalorder %s225, %s226
      %p237 = scmp.eq.s32.totalorder %s34, 0
      %p238 = por %p236, %p237
      %p239 = scmp.ne.s32.totalorder %s225, %s226
      %p240 = scmp.eq.s32.totalorder %s35, 1
      %p241 = por %p239, %p240
      %p243 = scmp.ne.s32.totalorder %s226, %s242
      %p244 = scmp.eq.s32.totalorder %s35, 0
      %p245 = por %p243, %p244
      %s246 = ssub.s32 %s29, %s36
      %p247 = scmp.eq.s32.totalorder %s246, 0
      %s249 = sadd.s32 %s248, 1
      %s250 = scalar_select %p247, %s248, %s249
      %p253 = pneg %p247
      %p254 = scmp.eq.s32.totalorder %s29, 1
      %p255 = por %p253, %p254
      %p256 = scmp.ne.s32.totalorder %s248, %s251
      %p257 = scmp.eq.s32.totalorder %s29, 0
      %p258 = por %p256, %p257
      %p259 = scmp.ne.s32.totalorder %s248, %s251
      %p260 = scmp.eq.s32.totalorder %s34, 1
      %p261 = por %p259, %p260
      %p262 = scmp.ne.s32.totalorder %s251, %s252
      %p263 = scmp.eq.s32.totalorder %s34, 0
      %p264 = por %p262, %p263
      %p265 = scmp.ne.s32.totalorder %s251, %s252
      %p266 = scmp.eq.s32.totalorder %s35, 1
      %p267 = por %p265, %p266
      %p269 = scmp.ne.s32.totalorder %s252, %s268
      %p270 = scmp.eq.s32.totalorder %s35, 0
      %p271 = por %p269, %p270
      %s272 = ssub.s32 %s29, %s36
      %p273 = scmp.eq.s32.totalorder %s272, 0
      %s275 = sadd.s32 %s274, 1
      %s276 = scalar_select %p273, %s274, %s275
      %p279 = pneg %p273
      %p280 = scmp.eq.s32.totalorder %s29, 1
      %p281 = por %p279, %p280
      %p282 = scmp.ne.s32.totalorder %s274, %s277
      %p283 = scmp.eq.s32.totalorder %s29, 0
      %p284 = por %p282, %p283
      %p285 = scmp.ne.s32.totalorder %s274, %s277
      %p286 = scmp.eq.s32.totalorder %s34, 1
      %p287 = por %p285, %p286
      %p288 = scmp.ne.s32.totalorder %s277, %s278
      %p289 = scmp.eq.s32.totalorder %s34, 0
      %p290 = por %p288, %p289
      %p291 = scmp.ne.s32.totalorder %s277, %s278
      %p292 = scmp.eq.s32.totalorder %s35, 1
      %p293 = por %p291, %p292
      %p295 = scmp.ne.s32.totalorder %s278, %s294
      %p296 = scmp.eq.s32.totalorder %s35, 0
      %p297 = por %p295, %p296
      %s298 = ssub.s32 %s29, %s36
      %p299 = scmp.eq.s32.totalorder %s298, 0
      %s301 = sadd.s32 %s300, 1
      %s302 = scalar_select %p299, %s300, %s301
      %p305 = pneg %p299
      %p306 = scmp.eq.s32.totalorder %s29, 1
      %p307 = por %p305, %p306
      %p308 = scmp.ne.s32.totalorder %s300, %s303
      %p309 = scmp.eq.s32.totalorder %s29, 0
      %p310 = por %p308, %p309
      %p311 = scmp.ne.s32.totalorder %s300, %s303
      %p312 = scmp.eq.s32.totalorder %s34, 1
      %p313 = por %p311, %p312
      %p314 = scmp.ne.s32.totalorder %s303, %s304
      %p315 = scmp.eq.s32.totalorder %s34, 0
      %p316 = por %p314, %p315
      %p317 = scmp.ne.s32.totalorder %s303, %s304
      %p318 = scmp.eq.s32.totalorder %s35, 1
      %p319 = por %p317, %p318
      %p321 = scmp.ne.s32.totalorder %s304, %s320
      %p322 = scmp.eq.s32.totalorder %s35, 0
      %p323 = por %p321, %p322
      %s324 = ssub.s32 %s29, %s36
      %p325 = scmp.eq.s32.totalorder %s324, 0
      %s327 = sadd.s32 %s326, 1
      %s328 = scalar_select %p325, %s326, %s327
      %p331 = pneg %p325
      %p332 = scmp.eq.s32.totalorder %s29, 1
      %p333 = por %p331, %p332
      %p334 = scmp.ne.s32.totalorder %s326, %s329
      %p335 = scmp.eq.s32.totalorder %s29, 0
      %p336 = por %p334, %p335
      %p337 = scmp.ne.s32.totalorder %s326, %s329
      %p338 = scmp.eq.s32.totalorder %s34, 1
      %p339 = por %p337, %p338
      %p340 = scmp.ne.s32.totalorder %s329, %s330
      %p341 = scmp.eq.s32.totalorder %s34, 0
      %p342 = por %p340, %p341
      %p343 = scmp.ne.s32.totalorder %s329, %s330
      %p344 = scmp.eq.s32.totalorder %s35, 1
      %p345 = por %p343, %p344
      %p347 = scmp.ne.s32.totalorder %s330, %s346
      %p348 = scmp.eq.s32.totalorder %s35, 0
      %p349 = por %p347, %p348
      %s350 = ssub.s32 %s29, %s36
      %p351 = scmp.eq.s32.totalorder %s350, 0
      %s353 = sadd.s32 %s352, 1
      %s354 = scalar_select %p351, %s352, %s353
      %p357 = pneg %p351
      %p358 = scmp.eq.s32.totalorder %s29, 1
      %p359 = por %p357, %p358
      %p360 = scmp.ne.s32.totalorder %s352, %s355
      %p361 = scmp.eq.s32.totalorder %s29, 0
      %p362 = por %p360, %p361
      %p363 = scmp.ne.s32.totalorder %s352, %s355
      %p364 = scmp.eq.s32.totalorder %s34, 1
      %p365 = por %p363, %p364
      %p366 = scmp.ne.s32.totalorder %s355, %s356
      %p367 = scmp.eq.s32.totalorder %s34, 0
      %p368 = por %p366, %p367
      %p369 = scmp.ne.s32.totalorder %s355, %s356
      %p370 = scmp.eq.s32.totalorder %s35, 1
      %p371 = por %p369, %p370
      %p373 = scmp.ne.s32.totalorder %s356, %s372
      %p374 = scmp.eq.s32.totalorder %s35, 0
      %p375 = por %p373, %p374
      %s376 = ssub.s32 %s29, %s36
      %p377 = scmp.eq.s32.totalorder %s376, 0
      %s379 = sadd.s32 %s378, 1
      %s380 = scalar_select %p377, %s378, %s379
      %p383 = pneg %p377
      %p384 = scmp.eq.s32.totalorder %s29, 1
      %p385 = por %p383, %p384
      %p386 = scmp.ne.s32.totalorder %s378, %s381
      %p387 = scmp.eq.s32.totalorder %s29, 0
      %p388 = por %p386, %p387
      %p389 = scmp.ne.s32.totalorder %s378, %s381
      %p390 = scmp.eq.s32.totalorder %s34, 1
      %p391 = por %p389, %p390
      %p392 = scmp.ne.s32.totalorder %s381, %s382
      %p393 = scmp.eq.s32.totalorder %s34, 0
      %p394 = por %p392, %p393
      %p395 = scmp.ne.s32.totalorder %s381, %s382
      %p396 = scmp.eq.s32.totalorder %s35, 1
      %p397 = por %p395, %p396
      %p399 = scmp.ne.s32.totalorder %s382, %s398
      %p400 = scmp.eq.s32.totalorder %s35, 0
      %p401 = por %p399, %p400
      %s403 = sadd.s32 %s402, 1
      %p406 = scmp.eq.s32.totalorder %s29, 1
      %p407 = scmp.ne.s32.totalorder %s402, %s404
      %p408 = scmp.eq.s32.totalorder %s29, 0
      %p409 = por %p407, %p408
      %p410 = scmp.ne.s32.totalorder %s402, %s404
      %p411 = scmp.eq.s32.totalorder %s34, 1
      %p412 = por %p410, %p411
      %p413 = scmp.ne.s32.totalorder %s404, %s405
      %p414 = scmp.eq.s32.totalorder %s34, 0
      %p415 = por %p413, %p414
      %p416 = scmp.ne.s32.totalorder %s404, %s405
      %p417 = scmp.eq.s32.totalorder %s35, 1
      %p418 = por %p416, %p417
      %p420 = scmp.ne.s32.totalorder %s405, %s419
      %p421 = scmp.eq.s32.totalorder %s35, 0
      %p422 = por %p420, %p421
      %s424 = sadd.s32 %s423, 1
      %p427 = scmp.eq.s32.totalorder %s29, 1
      %p428 = scmp.ne.s32.totalorder %s423, %s425
      %p429 = scmp.eq.s32.totalorder %s29, 0
      %p430 = por %p428, %p429
      %p431 = scmp.ne.s32.totalorder %s423, %s425
      %p432 = scmp.eq.s32.totalorder %s34, 1
      %p433 = por %p431, %p432
      %p434 = scmp.ne.s32.totalorder %s425, %s426
      %p435 = scmp.eq.s32.totalorder %s34, 0
      %p436 = por %p434, %p435
      %p437 = scmp.ne.s32.totalorder %s425, %s426
      %p438 = scmp.eq.s32.totalorder %s35, 1
      %p439 = por %p437, %p438
      %p441 = scmp.ne.s32.totalorder %s426, %s440
      %p442 = scmp.eq.s32.totalorder %s35, 0
      %p443 = por %p441, %p442
      %s445 = sadd.s32 %s444, 1
      %p448 = scmp.eq.s32.totalorder %s29, 1
      %p449 = scmp.ne.s32.totalorder %s444, %s446
      %p450 = scmp.eq.s32.totalorder %s29, 0
      %p451 = por %p449, %p450
      %p452 = scmp.ne.s32.totalorder %s444, %s446
      %p453 = scmp.eq.s32.totalorder %s34, 1
      %p454 = por %p452, %p453
      %p455 = scmp.ne.s32.totalorder %s446, %s447
      %p456 = scmp.eq.s32.totalorder %s34, 0
      %p457 = por %p455, %p456
      %p458 = scmp.ne.s32.totalorder %s446, %s447
      %p459 = scmp.eq.s32.totalorder %s35, 1
      %p460 = por %p458, %p459
      %p462 = scmp.ne.s32.totalorder %s447, %s461
      %p463 = scmp.eq.s32.totalorder %s35, 0
      %p464 = por %p462, %p463
      %s466 = sadd.s32 %s465, 1
      %p469 = scmp.eq.s32.totalorder %s29, 1
      %p470 = scmp.ne.s32.totalorder %s465, %s467
      %p471 = scmp.eq.s32.totalorder %s29, 0
      %p472 = por %p470, %p471
      %p473 = scmp.ne.s32.totalorder %s465, %s467
      %p474 = scmp.eq.s32.totalorder %s34, 1
      %p475 = por %p473, %p474
      %p476 = scmp.ne.s32.totalorder %s467, %s468
      %p477 = scmp.eq.s32.totalorder %s34, 0
      %p478 = por %p476, %p477
      %p479 = scmp.ne.s32.totalorder %s467, %s468
      %p480 = scmp.eq.s32.totalorder %s35, 1
      %p481 = por %p479, %p480
      %p483 = scmp.ne.s32.totalorder %s468, %s482
      %p484 = scmp.eq.s32.totalorder %s35, 0
      %p485 = por %p483, %p484
      %s487 = sadd.s32 %s486, 1
      %p490 = scmp.eq.s32.totalorder %s29, 1
      %p491 = scmp.ne.s32.totalorder %s486, %s488
      %p492 = scmp.eq.s32.totalorder %s29, 0
      %p493 = por %p491, %p492
      %p494 = scmp.ne.s32.totalorder %s486, %s488
      %p495 = scmp.eq.s32.totalorder %s34, 1
      %p496 = por %p494, %p495
      %p497 = scmp.ne.s32.totalorder %s488, %s489
      %p498 = scmp.eq.s32.totalorder %s34, 0
      %p499 = por %p497, %p498
      %p500 = scmp.ne.s32.totalorder %s488, %s489
      %p501 = scmp.eq.s32.totalorder %s35, 1
      %p502 = por %p500, %p501
      %p504 = scmp.ne.s32.totalorder %s489, %s503
      %p505 = scmp.eq.s32.totalorder %s35, 0
      %p506 = por %p504, %p505
      %s507 = ssub.s32 %s29, %s36
      %p508 = scmp.eq.s32.totalorder %s507, 0
      %s510 = sadd.s32 %s509, 1
      %s511 = scalar_select %p508, %s509, %s510
      %p514 = pneg %p508
      %p515 = scmp.eq.s32.totalorder %s29, 1
      %p516 = por %p514, %p515
      %p517 = scmp.ne.s32.totalorder %s509, %s512
      %p518 = scmp.eq.s32.totalorder %s29, 0
      %p519 = por %p517, %p518
      %p520 = scmp.ne.s32.totalorder %s509, %s512
      %p521 = scmp.eq.s32.totalorder %s34, 1
      %p522 = por %p520, %p521
      %p523 = scmp.ne.s32.totalorder %s512, %s513
      %p524 = scmp.eq.s32.totalorder %s34, 0
      %p525 = por %p523, %p524
      %p526 = scmp.ne.s32.totalorder %s512, %s513
      %p527 = scmp.eq.s32.totalorder %s35, 1
      %p528 = por %p526, %p527
      %p530 = scmp.ne.s32.totalorder %s513, %s529
      %p531 = scmp.eq.s32.totalorder %s35, 0
      %p532 = por %p530, %p531
      %p533 = scmp.le.s32.totalorder 1, %s29
      %p534 = scmp.lt.s32.totalorder %s29, 3
      %p535 = pnand %p533, %p534
      %p536 = pneg %p535
      // Predicated region
      $region9: #{tpu_custom_call.1} parent=5 // pred_check
        _
      $region10: #{tpu_custom_call.1} parent=5 // pred_check_branch
        %538 = sbr.rel (%p535) target = $region12
      $region11: #{tpu_custom_call.1} parent=5 // pred_region
        %s539 = ssub.s32 %s29, 1
        // Predicated region
        $region13: #{tpu_custom_call.1} parent=11 // pred_check
          %p540 = pneg %p50
        $region14: #{tpu_custom_call.1} parent=11 // pred_check_branch
          %542 = sbr.rel (%p540) target = $region16
        $region15: #{tpu_custom_call.1} parent=11 // pred_region
          %544 = vsyncadd [#allocation4], 0
          %s545 = sshll.u32 %s0, 4
          %s546 = int_to_ptr.hbm [resolvable:$true] %s545
          %s547 = sshll.u32 [#allocation3], 4
          %s548 = int_to_ptr.vmem [resolvable:$true] %s547
          %553 = dma.hbm_to_vmem [thread:$0]  %s546, 256, %s548, [#allocation4], 128, 128, 8
        $region16: #{tpu_custom_call.1} parent=11 // pred_fallthru
          _
        // Predicated region
        $region17: #{tpu_custom_call.1} parent=11 // pred_check
          %p554 = pneg %p71
        $region18: #{tpu_custom_call.1} parent=11 // pred_check_branch
          %556 = sbr.rel (%p554) target = $region20
        $region19: #{tpu_custom_call.1} parent=11 // pred_region
          _
        $region20: #{tpu_custom_call.1} parent=11 // pred_fallthru
          _
        // Predicated region
        $region21: #{tpu_custom_call.1} parent=11 // pred_check
          %p557 = pneg %p92
        $region22: #{tpu_custom_call.1} parent=11 // pred_check_branch
          %559 = sbr.rel (%p557) target = $region24
        $region23: #{tpu_custom_call.1} parent=11 // pred_region
          _
        $region24: #{tpu_custom_call.1} parent=11 // pred_fallthru
          _
        // Predicated region
        $region25: #{tpu_custom_call.1} parent=11 // pred_check
          %p560 = pneg %p113
        $region26: #{tpu_custom_call.1} parent=11 // pred_check_branch
          %562 = sbr.rel (%p560) target = $region28
        $region27: #{tpu_custom_call.1} parent=11 // pred_region
          _
        $region28: #{tpu_custom_call.1} parent=11 // pred_fallthru
          _
        // Predicated region
        $region29: #{tpu_custom_call.1} parent=11 // pred_check
          %p563 = pneg %p134
        $region30: #{tpu_custom_call.1} parent=11 // pred_check_branch
          %565 = sbr.rel (%p563) target = $region32
        $region31: #{tpu_custom_call.1} parent=11 // pred_region
          _
        $region32: #{tpu_custom_call.1} parent=11 // pred_fallthru
          _
        // Predicated region
        $region33: #{tpu_custom_call.1} parent=11 // pred_check
          %p566 = pneg %p415
        $region34: #{tpu_custom_call.1} parent=11 // pred_check_branch
          %568 = sbr.rel (%p566) target = $region36
        $region35: #{tpu_custom_call.1} parent=11 // pred_region
          _
        $region36: #{tpu_custom_call.1} parent=11 // pred_fallthru
          _
        // Predicated region
        $region37: #{tpu_custom_call.1} parent=11 // pred_check
          %p569 = pneg %p436
        $region38: #{tpu_custom_call.1} parent=11 // pred_check_branch
          %571 = sbr.rel (%p569) target = $region40
        $region39: #{tpu_custom_call.1} parent=11 // pred_region
          _
        $region40: #{tpu_custom_call.1} parent=11 // pred_fallthru
          _
        // Predicated region
        $region41: #{tpu_custom_call.1} parent=11 // pred_check
          %p572 = pneg %p457
        $region42: #{tpu_custom_call.1} parent=11 // pred_check_branch
          %574 = sbr.rel (%p572) target = $region44
        $region43: #{tpu_custom_call.1} parent=11 // pred_region
          _
        $region44: #{tpu_custom_call.1} parent=11 // pred_fallthru
          _
        // Predicated region
        $region45: #{tpu_custom_call.1} parent=11 // pred_check
          %p575 = pneg %p478
        $region46: #{tpu_custom_call.1} parent=11 // pred_check_branch
          %577 = sbr.rel (%p575) target = $region48
        $region47: #{tpu_custom_call.1} parent=11 // pred_region
          _
        $region48: #{tpu_custom_call.1} parent=11 // pred_fallthru
          _
      $region12: #{tpu_custom_call.1} parent=5 // pred_fallthru
        _
      %p578 = scmp.lt.s32.totalorder %s29, 2
      // Predicated region
      $region49: #{tpu_custom_call.1} parent=5 // pred_check
        %p579 = pneg %p578
      $region50: #{tpu_custom_call.1} parent=5 // pred_check_branch
        %581 = sbr.rel (%p579) target = $region52
      $region51: #{tpu_custom_call.1} parent=5 // pred_region
        // Predicated region
        $region53: #{tpu_custom_call.1} parent=51 // pred_check
          %p582 = pneg %p154
        $region54: #{tpu_custom_call.1} parent=51 // pred_check_branch
          %584 = sbr.rel (%p582) target = $region56
        $region55: #{tpu_custom_call.1} parent=51 // pred_region
          %p585 = scmp.lt.s32.totalorder %s29, 1
          %s586 = scalar_select %p585, %s29, 1
          %s587 = scalar_lea.vmem %s5, %s586
        $region56: #{tpu_custom_call.1} parent=51 // pred_fallthru
          _
        // Predicated region
        $region57: #{tpu_custom_call.1} parent=51 // pred_check
          %p588 = pneg %p180
        $region58: #{tpu_custom_call.1} parent=51 // pred_check_branch
          %590 = sbr.rel (%p588) target = $region60
        $region59: #{tpu_custom_call.1} parent=51 // pred_region
          %p591 = scmp.lt.s32.totalorder %s29, 1
          %s592 = scalar_select %p591, %s29, 1
          %s593 = scalar_lea.vmem %s6, %s592
        $region60: #{tpu_custom_call.1} parent=51 // pred_fallthru
          _
        // Predicated region
        $region61: #{tpu_custom_call.1} parent=51 // pred_check
          %p594 = pneg %p206
        $region62: #{tpu_custom_call.1} parent=51 // pred_check_branch
          %596 = sbr.rel (%p594) target = $region64
        $region63: #{tpu_custom_call.1} parent=51 // pred_region
          %p597 = scmp.lt.s32.totalorder %s29, 1
          %s598 = scalar_select %p597, %s29, 1
          %s599 = smul.addr %s598, 4
          %s600 = smul.addr %s599, 4
          %s601 = scalar_lea.vmem %s7, %s600
        $region64: #{tpu_custom_call.1} parent=51 // pred_fallthru
          _
        // Predicated region
        $region65: #{tpu_custom_call.1} parent=51 // pred_check
          %p602 = pneg %p232
        $region66: #{tpu_custom_call.1} parent=51 // pred_check_branch
          %604 = sbr.rel (%p602) target = $region68
        $region67: #{tpu_custom_call.1} parent=51 // pred_region
          %p605 = scmp.lt.s32.totalorder %s29, 1
          %s606 = scalar_select %p605, %s29, 1
          %s607 = scalar_lea.vmem %s8, %s606
        $region68: #{tpu_custom_call.1} parent=51 // pred_fallthru
          _
        // Predicated region
        $region69: #{tpu_custom_call.1} parent=51 // pred_check
          %p608 = pneg %p258
        $region70: #{tpu_custom_call.1} parent=51 // pred_check_branch
          %610 = sbr.rel (%p608) target = $region72
        $region71: #{tpu_custom_call.1} parent=51 // pred_region
          %p611 = scmp.lt.s32.totalorder %s29, 1
          %s612 = scalar_select %p611, %s29, 1
          %s613 = scalar_lea.vmem %s9, %s612
        $region72: #{tpu_custom_call.1} parent=51 // pred_fallthru
          _
        // Predicated region
        $region73: #{tpu_custom_call.1} parent=51 // pred_check
          %p614 = pneg %p284
        $region74: #{tpu_custom_call.1} parent=51 // pred_check_branch
          %616 = sbr.rel (%p614) target = $region76
        $region75: #{tpu_custom_call.1} parent=51 // pred_region
          %p617 = scmp.lt.s32.totalorder %s29, 1
          %s618 = scalar_select %p617, %s29, 1
          %s619 = scalar_lea.vmem %s10, %s618
        $region76: #{tpu_custom_call.1} parent=51 // pred_fallthru
          _
        // Predicated region
        $region77: #{tpu_custom_call.1} parent=51 // pred_check
          %p620 = pneg %p310
        $region78: #{tpu_custom_call.1} parent=51 // pred_check_branch
          %622 = sbr.rel (%p620) target = $region80
        $region79: #{tpu_custom_call.1} parent=51 // pred_region
          %p623 = scmp.lt.s32.totalorder %s29, 1
          %s624 = scalar_select %p623, %s29, 1
          %s625 = smul.addr %s624, 4
          %s626 = smul.addr %s625, 4
          %s627 = scalar_lea.vmem %s11, %s626
        $region80: #{tpu_custom_call.1} parent=51 // pred_fallthru
          _
        // Predicated region
        $region81: #{tpu_custom_call.1} parent=51 // pred_check
          %p628 = pneg %p336
        $region82: #{tpu_custom_call.1} parent=51 // pred_check_branch
          %630 = sbr.rel (%p628) target = $region84
        $region83: #{tpu_custom_call.1} parent=51 // pred_region
          %p631 = scmp.lt.s32.totalorder %s29, 1
          %s632 = scalar_select %p631, %s29, 1
          %s633 = scalar_lea.vmem %s12, %s632
        $region84: #{tpu_custom_call.1} parent=51 // pred_fallthru
          _
        // Predicated region
        $region85: #{tpu_custom_call.1} parent=51 // pred_check
          %p634 = pneg %p362
        $region86: #{tpu_custom_call.1} parent=51 // pred_check_branch
          %636 = sbr.rel (%p634) target = $region88
        $region87: #{tpu_custom_call.1} parent=51 // pred_region
          %p637 = scmp.lt.s32.totalorder %s29, 1
          %s638 = scalar_select %p637, %s29, 1
          %s639 = smul.addr %s638, 8
          %s640 = smul.addr %s639, 4
          %s641 = scalar_lea.vmem %s13, %s640
        $region88: #{tpu_custom_call.1} parent=51 // pred_fallthru
          _
        // Predicated region
        $region89: #{tpu_custom_call.1} parent=51 // pred_check
          %p642 = pneg %p388
        $region90: #{tpu_custom_call.1} parent=51 // pred_check_branch
          %644 = sbr.rel (%p642) target = $region92
        $region91: #{tpu_custom_call.1} parent=51 // pred_region
          %p645 = scmp.lt.s32.totalorder %s29, 1
          %s646 = scalar_select %p645, %s29, 1
          %s647 = scalar_lea.vmem %s14, %s646
        $region92: #{tpu_custom_call.1} parent=51 // pred_fallthru
          _
      $region52: #{tpu_custom_call.1} parent=5 // pred_fallthru
        _
      %p648 = scmp.le.s32.totalorder 1, %s29
      %p649 = scmp.lt.s32.totalorder %s29, 3
      %p650 = pnand %p648, %p649
      %p651 = pneg %p650
      // Predicated region
      $region93: #{tpu_custom_call.1} parent=5 // pred_check
        _
      $region94: #{tpu_custom_call.1} parent=5 // pred_check_branch
        %653 = sbr.rel (%p650) target = $region96
      $region95: #{tpu_custom_call.1} parent=5 // pred_region
        %s654 = ssub.s32 %s29, 1
        // Predicated region
        $region97: #{tpu_custom_call.1} parent=95 // pred_check
          %p655 = pneg %p50
        $region98: #{tpu_custom_call.1} parent=95 // pred_check_branch
          %657 = sbr.rel (%p655) target = $region100
        $region99: #{tpu_custom_call.1} parent=95 // pred_region
          %659 = dma.done [#allocation4], 256
        $region100: #{tpu_custom_call.1} parent=95 // pred_fallthru
          _
        %p660 = pneg %p50
        %p661 = pneg %p47
        %p662 = pneg %p71
        %p663 = pneg %p68
        %p664 = pneg %p92
        %p665 = pneg %p89
        %p666 = pneg %p113
        %p667 = pneg %p110
        %p668 = pneg %p134
        %p669 = pneg %p131
        %p670 = scmp.lt.s32.totalorder %s34, 1
        %s671 = scalar_select %p670, %s34, 1
        %s672 = scalar_lea.vmem %s5, %s671
        %p673 = pneg %p160
        %p674 = pneg %p157
        %p675 = scmp.lt.s32.totalorder %s34, 1
        %s676 = scalar_select %p675, %s34, 1
        %s677 = scalar_lea.vmem %s6, %s676
        %p678 = pneg %p186
        %p679 = pneg %p183
        %p680 = scmp.lt.s32.totalorder %s34, 1
        %s681 = scalar_select %p680, %s34, 1
        %s682 = smul.addr %s681, 4
        %s683 = smul.addr %s682, 4
        %s684 = scalar_lea.vmem %s7, %s683
        %p685 = pneg %p212
        %p686 = pneg %p209
        %p687 = scmp.lt.s32.totalorder %s34, 1
        %s688 = scalar_select %p687, %s34, 1
        %s689 = scalar_lea.vmem %s8, %s688
        %p690 = pneg %p238
        %p691 = pneg %p235
        %p692 = scmp.lt.s32.totalorder %s34, 1
        %s693 = scalar_select %p692, %s34, 1
        %s694 = scalar_lea.vmem %s9, %s693
        %p695 = pneg %p264
        %p696 = pneg %p261
        %p697 = scmp.lt.s32.totalorder %s34, 1
        %s698 = scalar_select %p697, %s34, 1
        %s699 = scalar_lea.vmem %s10, %s698
        %p700 = pneg %p290
        %p701 = pneg %p287
        %p702 = scmp.lt.s32.totalorder %s34, 1
        %s703 = scalar_select %p702, %s34, 1
        %s704 = smul.addr %s703, 4
        %s705 = smul.addr %s704, 4
        %s706 = scalar_lea.vmem %s11, %s705
        %p707 = pneg %p316
        %p708 = pneg %p313
        %p709 = scmp.lt.s32.totalorder %s34, 1
        %s710 = scalar_select %p709, %s34, 1
        %s711 = scalar_lea.vmem %s12, %s710
        %p712 = pneg %p342
        %p713 = pneg %p339
        %p714 = scmp.lt.s32.totalorder %s34, 1
        %s715 = scalar_select %p714, %s34, 1
        %s716 = smul.addr %s715, 8
        %s717 = smul.addr %s716, 4
        %s718 = scalar_lea.vmem %s13, %s717
        %p719 = pneg %p368
        %p720 = pneg %p365
        %p721 = scmp.lt.s32.totalorder %s34, 1
        %s722 = scalar_select %p721, %s34, 1
        %s723 = scalar_lea.vmem %s14, %s722
        %p724 = pneg %p394
        %p725 = pneg %p391
        %p726 = pneg %p415
        %p727 = pneg %p412
        %p728 = pneg %p436
        %p729 = pneg %p433
        %p730 = pneg %p457
        %p731 = pneg %p454
        %p732 = pneg %p478
        %p733 = pneg %p475
        %p734 = pneg %p499
        %p735 = pneg %p496
        %p736 = pneg %p525
        %p737 = pneg %p522
        %p738 = scmp.lt.s32.totalorder %s34, 1
        %s739 = scalar_select %p738, %s34, 1
        %s740 = smul.addr %s739, 12
        %s741 = smul.addr %s740, 8
        %s742 = scalar_lea.vmem %s20, %s741
        %p743 = scmp.lt.s32.totalorder %s34, 1
        %s744 = scalar_select %p743, %s34, 1
        %s745 = scalar_lea.vmem %s5, %s744
        %p746 = scmp.lt.s32.totalorder %s34, 1
        %s747 = scalar_select %p746, %s34, 1
        %s748 = scalar_lea.vmem %s6, %s747
        %p749 = scmp.lt.s32.totalorder %s34, 1
        %s750 = scalar_select %p749, %s34, 1
        %s751 = smul.addr %s750, 4
        %s752 = smul.addr %s751, 4
        %s753 = scalar_lea.vmem %s7, %s752
        %p754 = scmp.lt.s32.totalorder %s34, 1
        %s755 = scalar_select %p754, %s34, 1
        %s756 = scalar_lea.vmem %s8, %s755
        %p757 = scmp.lt.s32.totalorder %s34, 1
        %s758 = scalar_select %p757, %s34, 1
        %s759 = scalar_lea.vmem %s9, %s758
        %p760 = scmp.lt.s32.totalorder %s34, 1
        %s761 = scalar_select %p760, %s34, 1
        %s762 = scalar_lea.vmem %s10, %s761
        %p763 = scmp.lt.s32.totalorder %s34, 1
        %s764 = scalar_select %p763, %s34, 1
        %s765 = smul.addr %s764, 4
        %s766 = smul.addr %s765, 4
        %s767 = scalar_lea.vmem %s11, %s766
        %p768 = scmp.lt.s32.totalorder %s34, 1
        %s769 = scalar_select %p768, %s34, 1
        %s770 = scalar_lea.vmem %s12, %s769
        %p771 = scmp.lt.s32.totalorder %s34, 1
        %s772 = scalar_select %p771, %s34, 1
        %s773 = smul.addr %s772, 8
        %s774 = smul.addr %s773, 4
        %s775 = scalar_lea.vmem %s13, %s774
        %p776 = scmp.lt.s32.totalorder %s34, 1
        %s777 = scalar_select %p776, %s34, 1
        %s778 = scalar_lea.vmem %s14, %s777
        %p779 = scmp.lt.s32.totalorder %s34, 1
        %s780 = scalar_select %p779, %s34, 1
        %s781 = smul.addr %s780, 12
        %s782 = smul.addr %s781, 8
        %s783 = scalar_lea.vmem %s20, %s782
        %p785 = scmp.eq.s32.totalorder %s34, 0
        // Predicated region
        $region101: #{tpu_custom_call.1} parent=95 // pred_check
          %p786 = pneg %p785
        $region102: #{tpu_custom_call.1} parent=95 // pred_check_branch
          %788 = sbr.rel (%p786) target = $region104
        $region103: #{tpu_custom_call.1} parent=95 // pred_region
          %v789 = vld [vmem:[#allocation3] sm:$0xff]
          %v790 = vld [vmem:[#allocation3 + $0x8] sm:$0xff]
          %v791 = vpack.c.bf16 %v790, %v789
          %v792 = vld [vmem:[%s2] sm:$0xf]
          %v793 = vld [vmem:[%s2 + $0x4] sm:$0xf]
          %v794 = vld [vmem:[%s2 + $0x8] sm:$0xf]
          %v795 = vld [vmem:[%s2 + $0xc] sm:$0xf]
          %v796 = vld [vmem:[%s2 + $0x10] sm:$0xf]
          %v797 = vld [vmem:[%s2 + $0x14] sm:$0xf]
          %v804 = vunpack.c.l.b16 %v792
          %v805 = vunpack.c.l.b16 %v793
          %v806 = vunpack.c.l.b16 %v794
          %v807 = vunpack.c.l.b16 %v795
          %v808 = vunpack.c.l.b16 %v796
          %v809 = vunpack.c.l.b16 %v797
          %v810 = vpack.c.b16 %v805, %v804
          %v811 = vpack.c.b16 %v807, %v806
          %v812 = vpack.c.b16 %v809, %v808
          %vm816 = vcmask 392192
          %v818 = vsel %vm816, %v791, 0
          %820 = vmatpush.bf16.msra.mxu0 0
          %821 = vmatpush.bf16.msra.mxu0 0
          %822 = vmatpush.bf16.msra.mxu0 0
          %823 = vmatpush.bf16.msra.mxu0 0
          %824 = vmatpush.bf16.msra.mxu0 0
          %825 = vmatpush.bf16.msra.mxu0 %v812
          %826 = vmatpush.bf16.msra.mxu0 %v811
          %827 = vmatpush.bf16.msra.mxu0 %v810
          %828 = vmatmul.bf16.gmra.mxu0 %v818
          %v829 = vpop.f32.mrf.mxu0
          %v830 = vadd.f32 0.0, %v829
          %v831 = vpop.f32.mrf.mxu0
          %v832 = vadd.f32 0.0, %v831
          %833 = vdwg.mxu0
          %v834 = vld [vmem:[%s1] sm:$0xf]
          %v835 = vld [vmem:[%s1 + $0x4] sm:$0xf]
          %v836 = vld [vmem:[%s1 + $0x8] sm:$0x1]
          %v837 = vpack.c.bf16 %v832, %v830
          %v841 = vunpack.c.l.b16 %v834
          %v842 = vunpack.c.l.b16 %v835
          %v843 = vunpack.c.l.b16 %v836
          %v844 = vpack.c.b16 %v842, %v841
          %v845 = vpack.c.b16 %v843, %v843
          %vm846 = vcmask 130048
          %v848 = vsel %vm846, %v844, 0
          %v851 = vsel %vm846, %v845, 0
          %853 = vmatpush.bf16.msra.mxu0 0
          %854 = vmatpush.bf16.msra.mxu0 0
          %855 = vmatpush.bf16.msra.mxu0 0
          %856 = vmatpush.bf16.msra.mxu0 0
          %857 = vmatpush.bf16.msra.mxu0 0
          %858 = vmatpush.bf16.msra.mxu0 0
          %859 = vmatpush.bf16.msra.mxu0 0
          %860 = vmatpush.bf16.msra.mxu0 %v837
          %861 = vmatmul.bf16.gmra.mxu0 %v848
          %v862 = vpop.f32.mrf.mxu0
          %v863 = vadd.f32 0.0, %v862
          %v864 = vpop.f32.mrf.mxu0
          %v865 = vadd.f32 0.0, %v864
          %866 = vmatmul.bf16.gmra.mxu0 %v851
          %v867 = vpop.f32.mrf.mxu0
          %v868 = vadd.f32 0.0, %v867
          %v869 = vpop.f32.mrf.mxu0
          %870 = vdwg.mxu0
          %v871 = vld [vmem:[%s3] sm:$0xff]
          %v872 = vld [vmem:[%s3 + $0x8] sm:$0xff]
          %v873 = vld [vmem:[%s3 + $0x10] sm:$0x3]
          %v874 = vadd.f32 %v871, %v863
          %v875 = vadd.f32 %v872, %v865
          %v876 = vadd.f32 %v873, %v868
          %vm877 = vcmask 261120
          %878 = vst.msk [vmem:[#allocation2] sm:$0xff] %vm877, %v874
          %879 = vst.msk [vmem:[#allocation2 + $0x8] sm:$0xff] %vm877, %v875
          %vm880 = vcmask 254976
          %881 = vst.msk [vmem:[#allocation2 + $0x10] sm:$0x3] %vm880, %v876
        $region104: #{tpu_custom_call.1} parent=95 // pred_fallthru
          _
        %v882 = vld [vmem:[#allocation2] sm:$0xff]
        %v883 = vld [vmem:[#allocation2 + $0x8] sm:$0xff]
        %v884 = vld [vmem:[#allocation2 + $0x10] sm:$0x3]
        %v885 = vld [vmem:[%s745] sm:$0x1]
        %v886 = vld [vmem:[%s748] sm:$0x1]
        %vm887 = vcmask 261120
        %v888 = vsel %vm887, %v882, 0.0
        %889 = vadd.xlane.f32.xlu0 %v888
        %v890 = vpop.xlane.xlu0 %889
        %v891 = vsel %vm887, %v883, 0.0
        %892 = vadd.xlane.f32.xlu0 %v891
        %v893 = vpop.xlane.xlu0 %892
        %vm894 = vcmask 254976
        %v895 = vsel %vm894, %v884, 0.0
        %896 = vadd.xlane.f32.xlu0 %v895
        %v897 = vpop.xlane.xlu0 %896
        %v898 = vrcp.pop 32.0
        %v899 = vmul.f32 32.0, %v898
        %v900 = vsub.f32 1.0, %v899
        %v901 = vmul.f32 %v898, %v900
        %v902 = vadd.f32 %v898, %v901
        %vm903 = vweird.f32 %v898
        %v904 = vsel %vm903, %v898, %v902
        %v905 = vmul.f32 %v890, %v904
        %v906 = vmul.f32 %v893, %v904
        %v907 = vmul.f32 %v897, %v904
        %v908 = vsub.f32 %v882, %v905
        %v909 = vsub.f32 %v883, %v906
        %v910 = vsub.f32 %v884, %v907
        %v911 = vmul.f32 %v908, %v908
        %v912 = vmul.f32 %v909, %v909
        %v913 = vmul.f32 %v910, %v910
        %v914 = vsel %vm887, %v911, 0.0
        %915 = vadd.xlane.f32.xlu0 %v914
        %v916 = vpop.xlane.xlu0 %915
        %v917 = vsel %vm887, %v912, 0.0
        %918 = vadd.xlane.f32.xlu0 %v917
        %v919 = vpop.xlane.xlu0 %918
        %v920 = vsel %vm894, %v913, 0.0
        %921 = vadd.xlane.f32.xlu0 %v920
        %v922 = vpop.xlane.xlu0 %921
        %v923 = vmul.f32 %v916, %v904
        %v924 = vmul.f32 %v919, %v904
        %v925 = vmul.f32 %v922, %v904
        %v926 = vadd.f32 %v923, 1e-05
        %v927 = vadd.f32 %v924, 1e-05
        %v928 = vadd.f32 %v925, 1e-05
        %v929 = vrsqrt.pop %v926
        %v930 = vmul.f32 %v929, %v926
        %v931 = vmul.f32 %v930, %v929
        %v932 = vmul.f32 0.5, %v931
        %v933 = vsub.f32 1.5, %v932
        %v934 = vmul.f32 %v929, %v933
        %vm935 = vweird.f32 %v926
        %vm936 = vweird.f32 %v929
        %vm937 = vmor %vm935, %vm936
        %v938 = vsel %vm937, %v929, %v934
        %v939 = vrsqrt.pop %v927
        %v940 = vmul.f32 %v939, %v927
        %v941 = vmul.f32 %v940, %v939
        %v942 = vmul.f32 0.5, %v941
        %v943 = vsub.f32 1.5, %v942
        %v944 = vmul.f32 %v939, %v943
        %vm945 = vweird.f32 %v927
        %vm946 = vweird.f32 %v939
        %vm947 = vmor %vm945, %vm946
        %v948 = vsel %vm947, %v939, %v944
        %v949 = vrsqrt.pop %v928
        %v950 = vmul.f32 %v949, %v928
        %v951 = vmul.f32 %v950, %v949
        %v952 = vmul.f32 0.5, %v951
        %v953 = vsub.f32 1.5, %v952
        %v954 = vmul.f32 %v949, %v953
        %vm955 = vweird.f32 %v928
        %vm956 = vweird.f32 %v949
        %vm957 = vmor %vm955, %vm956
        %v958 = vsel %vm957, %v949, %v954
        %v959 = vmul.f32 %v908, %v938
        %v960 = vmul.f32 %v909, %v948
        %v961 = vmul.f32 %v910, %v958
        %v963 = vperm.slane %v885, 0
        %v965 = vmul.f32 %v959, %v963
        %v966 = vmul.f32 %v960, %v963
        %v967 = vmul.f32 %v961, %v963
        %v969 = vperm.slane %v886, 0
        %v971 = vadd.f32 %v965, %v969
        %v972 = vadd.f32 %v966, %v969
        %v973 = vadd.f32 %v967, %v969
        %v974 = vpack.c.bf16 %v972, %v971
        %v975 = vpack.c.bf16 %v973, %v973
        %v976 = vld [vmem:[%s753] sm:$0xf]
        %v977 = vld [vmem:[%s753 + $0x4] sm:$0xf]
        %v978 = vld [vmem:[%s753 + $0x8] sm:$0xf]
        %v979 = vld [vmem:[%s753 + $0xc] sm:$0xf]
        %v980 = vld [vmem:[%s756] sm:$0x1]
        %v982 = vperm.slane %v980, 0
        %v988 = vunpack.c.l.b16 %v976
        %v989 = vunpack.c.l.b16 %v977
        %v990 = vunpack.c.l.b16 %v978
        %v991 = vunpack.c.l.b16 %v979
        %v992 = vpack.c.b16 %v989, %v988
        %v993 = vpack.c.b16 %v991, %v990
        %v997 = vsel %vm887, %v974, 0
        %v1000 = vsel %vm887, %v975, 0
        %1002 = vmatpush.bf16.msra.mxu0 0
        %1003 = vmatpush.bf16.msra.mxu0 0
        %1004 = vmatpush.bf16.msra.mxu0 0
        %1005 = vmatpush.bf16.msra.mxu0 0
        %1006 = vmatpush.bf16.msra.mxu0 0
        %1007 = vmatpush.bf16.msra.mxu0 0
        %1008 = vmatpush.bf16.msra.mxu0 %v993
        %1009 = vmatpush.bf16.msra.mxu0 %v992
        %1010 = vmatmul.bf16.gmra.mxu0 %v997
        %v1011 = vpop.f32.mrf.mxu0
        %v1012 = vadd.f32 %v982, %v1011
        %v1013 = vpop.f32.mrf.mxu0
        %v1014 = vadd.f32 %v982, %v1013
        %1015 = vmatmul.bf16.gmra.mxu0 %v1000
        %v1016 = vpop.f32.mrf.mxu0
        %v1017 = vadd.f32 %v982, %v1016
        %v1018 = vpop.f32.mrf.mxu0
        %1019 = vdwg.mxu0
        %v1020 = vld [vmem:[%s4] sm:$0xff]
        %v1021 = vld [vmem:[%s4 + $0x8] sm:$0xff]
        %v1022 = vld [vmem:[%s4 + $0x10] sm:$0x3]
        %v1023 = vlaneseq
        %v1024 = vand.u32 %v1023, 127
        %vm1025 = vcmp.ge.s32.totalorder %v1024, 0
        %vm1026 = vcmp.lt.s32.totalorder %v1024, 8
        %vm1027 = vmand %vm1025, %vm1026
        %v1028 = vsel %vm1027, 1, 0
        %v1029 = vcvt.s32.f32 %v1028
        %v1030 = vmul.f32 %v1012, %v1029
        %v1031 = vmul.f32 %v1014, %v1029
        %v1032 = vmul.f32 %v1017, %v1029
        %v1033 = vpack.c.bf16 %v1031, %v1030
        %v1034 = vpack.c.bf16 %v1032, %v1032
        %1036 = vrot.lane.b32.xlu0 %v1029, 32
        %v1037 = vpop.permute.xlu0 %1036
        %v1039 = vmul.f32 %v1012, %v1037
        %v1040 = vmul.f32 %v1014, %v1037
        %v1041 = vmul.f32 %v1017, %v1037
        %v1042 = vpack.c.bf16 %v1040, %v1039
        %v1043 = vpack.c.bf16 %v1041, %v1041
        %1044 = vrot.lane.b32.xlu0 %v1029, 64
        %v1045 = vpop.permute.xlu0 %1044
        %v1047 = vmul.f32 %v1012, %v1045
        %v1048 = vmul.f32 %v1014, %v1045
        %v1049 = vmul.f32 %v1017, %v1045
        %v1050 = vpack.c.bf16 %v1048, %v1047
        %v1051 = vpack.c.bf16 %v1049, %v1049
        %1054 = vrot.lane.b32.xlu0 %v1042, 96
        %v1055 = vpop.permute.xlu0 %1054
        %1056 = vrot.lane.b32.xlu0 %v1043, 96
        %v1057 = vpop.permute.xlu0 %1056
        %v1059 = vsel %vm887, %v1033, 0
        %v1062 = vsel %vm887, %v1034, 0
        %v1065 = vsel %vm887, %v1055, 0
        %v1068 = vsel %vm887, %v1057, 0
        %1070 = vmatpush.bf16.xpose.msra.mxu0 0
        %1071 = vmatpush.bf16.xpose.msra.mxu0 0
        %1072 = vmatpush.bf16.xpose.msra.mxu0 0
        %1073 = vmatpush.bf16.xpose.msra.mxu0 0
        %1074 = vmatpush.bf16.xpose.msra.mxu0 0
        %1075 = vmatpush.bf16.xpose.msra.mxu0 0
        %1076 = vmatpush.bf16.xpose.msra.mxu0 %v1068
        %1077 = vmatpush.bf16.xpose.msra.mxu0 %v1065
        %1078 = vmatmul.bf16.gmra.mxu0 %v1059
        %v1079 = vpop.f32.mrf.mxu0
        %v1080 = vadd.f32 0.0, %v1079
        %v1081 = vpop.f32.mrf.mxu0
        %v1082 = vadd.f32 0.0, %v1081
        %1083 = vmatmul.bf16.gmra.mxu0 %v1062
        %v1084 = vpop.f32.mrf.mxu0
        %v1085 = vadd.f32 0.0, %v1084
        %v1086 = vpop.f32.mrf.mxu0
        %1087 = vdwg.mxu0
        %v1088 = vmul.f32 %v1080, 0.17677669
        %v1089 = vmul.f32 %v1082, 0.17677669
        %v1090 = vmul.f32 %v1085, 0.17677669
        %v1091 = vadd.f32 %v1088, %v1020
        %v1092 = vadd.f32 %v1089, %v1021
        %v1093 = vadd.f32 %v1090, %v1022
        %vm1094 = vcmask 146432
        %v1095 = vsel %vm1094, %v1091, -inf
        %1096 = vmax.xlane.f32.xlu0 %v1095
        %v1097 = vpop.xlane.xlu0 %1096
        %v1098 = vsel %vm1094, %v1092, -inf
        %1099 = vmax.xlane.f32.xlu0 %v1098
        %v1100 = vpop.xlane.xlu0 %1099
        %vm1101 = vcmask 140288
        %v1102 = vsel %vm1101, %v1093, -inf
        %1103 = vmax.xlane.f32.xlu0 %v1102
        %v1104 = vpop.xlane.xlu0 %1103
        %v1105 = vsub.f32 %v1091, %v1097
        %v1106 = vsub.f32 %v1092, %v1100
        %v1107 = vsub.f32 %v1093, %v1104
        %v1108 = vmul.f32 %v1105, 1.442695
        %v1109 = vpow.pop %v1108
        %v1110 = vmul.f32 %v1106, 1.442695
        %v1111 = vpow.pop %v1110
        %v1112 = vmul.f32 %v1107, 1.442695
        %v1113 = vpow.pop %v1112
        %v1114 = vsel %vm1094, %v1109, 0.0
        %1115 = vadd.xlane.f32.xlu0 %v1114
        %v1116 = vpop.xlane.xlu0 %1115
        %v1117 = vsel %vm1094, %v1111, 0.0
        %1118 = vadd.xlane.f32.xlu0 %v1117
        %v1119 = vpop.xlane.xlu0 %1118
        %v1120 = vsel %vm1101, %v1113, 0.0
        %1121 = vadd.xlane.f32.xlu0 %v1120
        %v1122 = vpop.xlane.xlu0 %1121
        %v1123 = vrcp.pop %v1116
        %v1124 = vrcp.pop %v1119
        %v1125 = vrcp.pop %v1122
        %v1126 = vmul.f32 %v1109, %v1123
        %v1127 = vmul.f32 %v1111, %v1124
        %v1128 = vmul.f32 %v1113, %v1125
        %1129 = vst.msk [vmem:[%s783] sm:$0xff] %vm1094, %v1126
        %1130 = vst.msk [vmem:[%s783 + $0x8] sm:$0xff] %vm1094, %v1127
        %1131 = vst.msk [vmem:[%s783 + $0x10] sm:$0x3] %vm1101, %v1128
        %v1132 = vpack.c.bf16 %v1127, %v1126
        %v1133 = vpack.c.bf16 %v1128, %v1128
        %vm1134 = vcmp.ge.s32.totalorder %v1024, 8
        %vm1135 = vcmp.lt.s32.totalorder %v1024, 16
        %vm1136 = vmand %vm1134, %vm1135
        %v1137 = vsel %vm1136, 1, 0
        %v1138 = vcvt.s32.f32 %v1137
        %v1139 = vmul.f32 %v1012, %v1138
        %v1140 = vmul.f32 %v1014, %v1138
        %v1141 = vmul.f32 %v1017, %v1138
        %v1142 = vpack.c.bf16 %v1140, %v1139
        %v1143 = vpack.c.bf16 %v1141, %v1141
        %1145 = vrot.lane.b32.xlu0 %v1138, 32
        %v1146 = vpop.permute.xlu0 %1145
        %v1148 = vmul.f32 %v1012, %v1146
        %v1149 = vmul.f32 %v1014, %v1146
        %v1150 = vmul.f32 %v1017, %v1146
        %v1151 = vpack.c.bf16 %v1149, %v1148
        %v1152 = vpack.c.bf16 %v1150, %v1150
        %1153 = vrot.lane.b32.xlu0 %v1138, 64
        %v1154 = vpop.permute.xlu0 %1153
        %v1156 = vmul.f32 %v1012, %v1154
        %v1157 = vmul.f32 %v1014, %v1154
        %v1158 = vmul.f32 %v1017, %v1154
        %v1159 = vpack.c.bf16 %v1157, %v1156
        %v1160 = vpack.c.bf16 %v1158, %v1158
        %1163 = vrot.lane.b32.xlu0 %v1151, 96
        %v1164 = vpop.permute.xlu0 %1163
        %1165 = vrot.lane.b32.xlu0 %v1152, 96
        %v1166 = vpop.permute.xlu0 %1165
        %v1168 = vsel %vm887, %v1142, 0
        %v1171 = vsel %vm887, %v1143, 0
        %v1174 = vsel %vm887, %v1164, 0
        %v1177 = vsel %vm887, %v1166, 0
        %1179 = vmatpush.bf16.xpose.msra.mxu0 0
        %1180 = vmatpush.bf16.xpose.msra.mxu0 0
        %1181 = vmatpush.bf16.xpose.msra.mxu0 0
        %1182 = vmatpush.bf16.xpose.msra.mxu0 0
        %1183 = vmatpush.bf16.xpose.msra.mxu0 0
        %1184 = vmatpush.bf16.xpose.msra.mxu0 0
        %1185 = vmatpush.bf16.xpose.msra.mxu0 %v1177
        %1186 = vmatpush.bf16.xpose.msra.mxu0 %v1174
        %1187 = vmatmul.bf16.gmra.mxu0 %v1168
        %v1188 = vpop.f32.mrf.mxu0
        %v1189 = vadd.f32 0.0, %v1188
        %v1190 = vpop.f32.mrf.mxu0
        %v1191 = vadd.f32 0.0, %v1190
        %1192 = vmatmul.bf16.gmra.mxu0 %v1171
        %v1193 = vpop.f32.mrf.mxu0
        %v1194 = vadd.f32 0.0, %v1193
        %v1195 = vpop.f32.mrf.mxu0
        %1196 = vdwg.mxu0
        %v1197 = vmul.f32 %v1189, 0.17677669
        %v1198 = vmul.f32 %v1191, 0.17677669
        %v1199 = vmul.f32 %v1194, 0.17677669
        %v1200 = vadd.f32 %v1197, %v1020
        %v1201 = vadd.f32 %v1198, %v1021
        %v1202 = vadd.f32 %v1199, %v1022
        %v1203 = vsel %vm1094, %v1200, -inf
        %1204 = vmax.xlane.f32.xlu0 %v1203
        %v1205 = vpop.xlane.xlu0 %1204
        %v1206 = vsel %vm1094, %v1201, -inf
        %1207 = vmax.xlane.f32.xlu0 %v1206
        %v1208 = vpop.xlane.xlu0 %1207
        %v1209 = vsel %vm1101, %v1202, -inf
        %1210 = vmax.xlane.f32.xlu0 %v1209
        %v1211 = vpop.xlane.xlu0 %1210
        %v1212 = vsub.f32 %v1200, %v1205
        %v1213 = vsub.f32 %v1201, %v1208
        %v1214 = vsub.f32 %v1202, %v1211
        %v1215 = vmul.f32 %v1212, 1.442695
        %v1216 = vpow.pop %v1215
        %v1217 = vmul.f32 %v1213, 1.442695
        %v1218 = vpow.pop %v1217
        %v1219 = vmul.f32 %v1214, 1.442695
        %v1220 = vpow.pop %v1219
        %v1221 = vsel %vm1094, %v1216, 0.0
        %1222 = vadd.xlane.f32.xlu0 %v1221
        %v1223 = vpop.xlane.xlu0 %1222
        %v1224 = vsel %vm1094, %v1218, 0.0
        %1225 = vadd.xlane.f32.xlu0 %v1224
        %v1226 = vpop.xlane.xlu0 %1225
        %v1227 = vsel %vm1101, %v1220, 0.0
        %1228 = vadd.xlane.f32.xlu0 %v1227
        %v1229 = vpop.xlane.xlu0 %1228
        %v1230 = vrcp.pop %v1223
        %v1231 = vrcp.pop %v1226
        %v1232 = vrcp.pop %v1229
        %v1233 = vmul.f32 %v1216, %v1230
        %v1234 = vmul.f32 %v1218, %v1231
        %v1235 = vmul.f32 %v1220, %v1232
        %s1236 = scalar_lea.vmem %s783, 24
        %1237 = vst.msk [vmem:[%s1236] sm:$0xff] %vm1094, %v1233
        %1238 = vst.msk [vmem:[%s1236 + $0x8] sm:$0xff] %vm1094, %v1234
        %1239 = vst.msk [vmem:[%s1236 + $0x10] sm:$0x3] %vm1101, %v1235
        %v1240 = vpack.c.bf16 %v1234, %v1233
        %v1241 = vpack.c.bf16 %v1235, %v1235
        %1244 = vrot.lane.b32.xlu0 %v1159, 64
        %v1245 = vpop.permute.xlu0 %1244
        %1246 = vrot.lane.b32.xlu0 %v1160, 64
        %v1247 = vpop.permute.xlu0 %1246
        %v1250 = vsel %vm1094, %v1240, 0
        %v1253 = vsel %vm1094, %v1241, 0
        %vm1255 = vcmask 1040384
        %v1257 = vsel %vm1255, %v1247, 0
        %1259 = vmatpush.bf16.msra.mxu0 0
        %1260 = vmatpush.bf16.msra.mxu0 0
        %1261 = vmatpush.bf16.msra.mxu0 0
        %1262 = vmatpush.bf16.msra.mxu0 0
        %1263 = vmatpush.bf16.msra.mxu0 0
        %1264 = vmatpush.bf16.msra.mxu0 0
        %1265 = vmatpush.bf16.msra.mxu0 %v1257
        %1266 = vmatpush.bf16.msra.mxu0 %v1245
        %1267 = vmatmul.bf16.gmra.mxu0 %v1250
        %v1268 = vpop.f32.mrf.mxu0
        %v1269 = vadd.f32 0.0, %v1268
        %v1270 = vpop.f32.mrf.mxu0
        %v1271 = vadd.f32 0.0, %v1270
        %1272 = vmatmul.bf16.gmra.mxu0 %v1253
        %v1273 = vpop.f32.mrf.mxu0
        %v1274 = vadd.f32 0.0, %v1273
        %v1275 = vpop.f32.mrf.mxu0
        %1276 = vdwg.mxu0
        %1279 = vrot.lane.b32.xlu0 %v1050, 64
        %v1280 = vpop.permute.xlu0 %1279
        %1281 = vrot.lane.b32.xlu0 %v1051, 64
        %v1282 = vpop.permute.xlu0 %1281
        %v1285 = vsel %vm1094, %v1132, 0
        %v1288 = vsel %vm1094, %v1133, 0
        %v1291 = vsel %vm1255, %v1282, 0
        %1293 = vmatpush.bf16.msra.mxu0 0
        %1294 = vmatpush.bf16.msra.mxu0 0
        %1295 = vmatpush.bf16.msra.mxu0 0
        %1296 = vmatpush.bf16.msra.mxu0 0
        %1297 = vmatpush.bf16.msra.mxu0 0
        %1298 = vmatpush.bf16.msra.mxu0 0
        %1299 = vmatpush.bf16.msra.mxu0 %v1291
        %1300 = vmatpush.bf16.msra.mxu0 %v1280
        %1301 = vmatmul.bf16.gmra.mxu0 %v1285
        %v1302 = vpop.f32.mrf.mxu0
        %v1303 = vadd.f32 %v1269, %v1302
        %v1304 = vpop.f32.mrf.mxu0
        %v1305 = vadd.f32 %v1271, %v1304
        %1306 = vmatmul.bf16.gmra.mxu0 %v1288
        %v1307 = vpop.f32.mrf.mxu0
        %v1308 = vadd.f32 %v1274, %v1307
        %v1309 = vpop.f32.mrf.mxu0
        %1310 = vdwg.mxu0
        %vm1311 = vcmp.ge.s32.totalorder %v1024, 16
        %vm1312 = vcmp.lt.s32.totalorder %v1024, 24
        %vm1313 = vmand %vm1311, %vm1312
        %v1314 = vsel %vm1313, 1, 0
        %v1315 = vcvt.s32.f32 %v1314
        %v1316 = vmul.f32 %v1012, %v1315
        %v1317 = vmul.f32 %v1014, %v1315
        %v1318 = vmul.f32 %v1017, %v1315
        %v1319 = vpack.c.bf16 %v1317, %v1316
        %v1320 = vpack.c.bf16 %v1318, %v1318
        %1322 = vrot.lane.b32.xlu0 %v1315, 32
        %v1323 = vpop.permute.xlu0 %1322
        %v1325 = vmul.f32 %v1012, %v1323
        %v1326 = vmul.f32 %v1014, %v1323
        %v1327 = vmul.f32 %v1017, %v1323
        %v1328 = vpack.c.bf16 %v1326, %v1325
        %v1329 = vpack.c.bf16 %v1327, %v1327
        %1330 = vrot.lane.b32.xlu0 %v1315, 64
        %v1331 = vpop.permute.xlu0 %1330
        %v1333 = vmul.f32 %v1012, %v1331
        %v1334 = vmul.f32 %v1014, %v1331
        %v1335 = vmul.f32 %v1017, %v1331
        %v1336 = vpack.c.bf16 %v1334, %v1333
        %v1337 = vpack.c.bf16 %v1335, %v1335
        %1340 = vrot.lane.b32.xlu0 %v1328, 96
        %v1341 = vpop.permute.xlu0 %1340
        %1342 = vrot.lane.b32.xlu0 %v1329, 96
        %v1343 = vpop.permute.xlu0 %1342
        %v1345 = vsel %vm887, %v1319, 0
        %v1348 = vsel %vm887, %v1320, 0
        %v1351 = vsel %vm887, %v1341, 0
        %v1354 = vsel %vm887, %v1343, 0
        %1356 = vmatpush.bf16.xpose.msra.mxu0 0
        %1357 = vmatpush.bf16.xpose.msra.mxu0 0
        %1358 = vmatpush.bf16.xpose.msra.mxu0 0
        %1359 = vmatpush.bf16.xpose.msra.mxu0 0
        %1360 = vmatpush.bf16.xpose.msra.mxu0 0
        %1361 = vmatpush.bf16.xpose.msra.mxu0 0
        %1362 = vmatpush.bf16.xpose.msra.mxu0 %v1354
        %1363 = vmatpush.bf16.xpose.msra.mxu0 %v1351
        %1364 = vmatmul.bf16.gmra.mxu0 %v1345
        %v1365 = vpop.f32.mrf.mxu0
        %v1366 = vadd.f32 0.0, %v1365
        %v1367 = vpop.f32.mrf.mxu0
        %v1368 = vadd.f32 0.0, %v1367
        %1369 = vmatmul.bf16.gmra.mxu0 %v1348
        %v1370 = vpop.f32.mrf.mxu0
        %v1371 = vadd.f32 0.0, %v1370
        %v1372 = vpop.f32.mrf.mxu0
        %1373 = vdwg.mxu0
        %v1374 = vmul.f32 %v1366, 0.17677669
        %v1375 = vmul.f32 %v1368, 0.17677669
        %v1376 = vmul.f32 %v1371, 0.17677669
        %v1377 = vadd.f32 %v1374, %v1020
        %v1378 = vadd.f32 %v1375, %v1021
        %v1379 = vadd.f32 %v1376, %v1022
        %v1380 = vsel %vm1094, %v1377, -inf
        %1381 = vmax.xlane.f32.xlu0 %v1380
        %v1382 = vpop.xlane.xlu0 %1381
        %v1383 = vsel %vm1094, %v1378, -inf
        %1384 = vmax.xlane.f32.xlu0 %v1383
        %v1385 = vpop.xlane.xlu0 %1384
        %v1386 = vsel %vm1101, %v1379, -inf
        %1387 = vmax.xlane.f32.xlu0 %v1386
        %v1388 = vpop.xlane.xlu0 %1387
        %v1389 = vsub.f32 %v1377, %v1382
        %v1390 = vsub.f32 %v1378, %v1385
        %v1391 = vsub.f32 %v1379, %v1388
        %v1392 = vmul.f32 %v1389, 1.442695
        %v1393 = vpow.pop %v1392
        %v1394 = vmul.f32 %v1390, 1.442695
        %v1395 = vpow.pop %v1394
        %v1396 = vmul.f32 %v1391, 1.442695
        %v1397 = vpow.pop %v1396
        %v1398 = vsel %vm1094, %v1393, 0.0
        %1399 = vadd.xlane.f32.xlu0 %v1398
        %v1400 = vpop.xlane.xlu0 %1399
        %v1401 = vsel %vm1094, %v1395, 0.0
        %1402 = vadd.xlane.f32.xlu0 %v1401
        %v1403 = vpop.xlane.xlu0 %1402
        %v1404 = vsel %vm1101, %v1397, 0.0
        %1405 = vadd.xlane.f32.xlu0 %v1404
        %v1406 = vpop.xlane.xlu0 %1405
        %v1407 = vrcp.pop %v1400
        %v1408 = vrcp.pop %v1403
        %v1409 = vrcp.pop %v1406
        %v1410 = vmul.f32 %v1393, %v1407
        %v1411 = vmul.f32 %v1395, %v1408
        %v1412 = vmul.f32 %v1397, %v1409
        %s1413 = scalar_lea.vmem %s783, 48
        %1414 = vst.msk [vmem:[%s1413] sm:$0xff] %vm1094, %v1410
        %1415 = vst.msk [vmem:[%s1413 + $0x8] sm:$0xff] %vm1094, %v1411
        %1416 = vst.msk [vmem:[%s1413 + $0x10] sm:$0x3] %vm1101, %v1412
        %v1417 = vpack.c.bf16 %v1411, %v1410
        %v1418 = vpack.c.bf16 %v1412, %v1412
        %1421 = vrot.lane.b32.xlu0 %v1336, 64
        %v1422 = vpop.permute.xlu0 %1421
        %1423 = vrot.lane.b32.xlu0 %v1337, 64
        %v1424 = vpop.permute.xlu0 %1423
        %v1427 = vsel %vm1094, %v1417, 0
        %v1430 = vsel %vm1094, %v1418, 0
        %v1433 = vsel %vm1255, %v1424, 0
        %1435 = vmatpush.bf16.msra.mxu0 0
        %1436 = vmatpush.bf16.msra.mxu0 0
        %1437 = vmatpush.bf16.msra.mxu0 0
        %1438 = vmatpush.bf16.msra.mxu0 0
        %1439 = vmatpush.bf16.msra.mxu0 0
        %1440 = vmatpush.bf16.msra.mxu0 0
        %1441 = vmatpush.bf16.msra.mxu0 %v1433
        %1442 = vmatpush.bf16.msra.mxu0 %v1422
        %1443 = vmatmul.bf16.gmra.mxu0 %v1427
        %v1444 = vpop.f32.mrf.mxu0
        %v1445 = vadd.f32 0.0, %v1444
        %v1446 = vpop.f32.mrf.mxu0
        %v1447 = vadd.f32 0.0, %v1446
        %1448 = vmatmul.bf16.gmra.mxu0 %v1430
        %v1449 = vpop.f32.mrf.mxu0
        %v1450 = vadd.f32 0.0, %v1449
        %v1451 = vpop.f32.mrf.mxu0
        %1452 = vdwg.mxu0
        %v1453 = vadd.f32 %v1303, %v1445
        %v1454 = vadd.f32 %v1305, %v1447
        %v1455 = vadd.f32 %v1308, %v1450
        %vm1456 = vcmp.ge.s32.totalorder %v1024, 24
        %vm1457 = vcmp.lt.s32.totalorder %v1024, 32
        %vm1458 = vmand %vm1456, %vm1457
        %v1459 = vsel %vm1458, 1, 0
        %v1460 = vcvt.s32.f32 %v1459
        %v1461 = vmul.f32 %v1012, %v1460
        %v1462 = vmul.f32 %v1014, %v1460
        %v1463 = vmul.f32 %v1017, %v1460
        %v1464 = vpack.c.bf16 %v1462, %v1461
        %v1465 = vpack.c.bf16 %v1463, %v1463
        %1467 = vrot.lane.b32.xlu0 %v1460, 32
        %v1468 = vpop.permute.xlu0 %1467
        %v1470 = vmul.f32 %v1012, %v1468
        %v1471 = vmul.f32 %v1014, %v1468
        %v1472 = vmul.f32 %v1017, %v1468
        %v1473 = vpack.c.bf16 %v1471, %v1470
        %v1474 = vpack.c.bf16 %v1472, %v1472
        %1475 = vrot.lane.b32.xlu0 %v1460, 64
        %v1476 = vpop.permute.xlu0 %1475
        %v1478 = vmul.f32 %v1012, %v1476
        %v1479 = vmul.f32 %v1014, %v1476
        %v1480 = vmul.f32 %v1017, %v1476
        %v1481 = vpack.c.bf16 %v1479, %v1478
        %v1482 = vpack.c.bf16 %v1480, %v1480
        %1485 = vrot.lane.b32.xlu0 %v1473, 96
        %v1486 = vpop.permute.xlu0 %1485
        %1487 = vrot.lane.b32.xlu0 %v1474, 96
        %v1488 = vpop.permute.xlu0 %1487
        %v1490 = vsel %vm887, %v1464, 0
        %v1493 = vsel %vm887, %v1465, 0
        %v1496 = vsel %vm887, %v1486, 0
        %v1499 = vsel %vm887, %v1488, 0
        %1501 = vmatpush.bf16.xpose.msra.mxu0 0
        %1502 = vmatpush.bf16.xpose.msra.mxu0 0
        %1503 = vmatpush.bf16.xpose.msra.mxu0 0
        %1504 = vmatpush.bf16.xpose.msra.mxu0 0
        %1505 = vmatpush.bf16.xpose.msra.mxu0 0
        %1506 = vmatpush.bf16.xpose.msra.mxu0 0
        %1507 = vmatpush.bf16.xpose.msra.mxu0 %v1499
        %1508 = vmatpush.bf16.xpose.msra.mxu0 %v1496
        %1509 = vmatmul.bf16.gmra.mxu0 %v1490
        %v1510 = vpop.f32.mrf.mxu0
        %v1511 = vadd.f32 0.0, %v1510
        %v1512 = vpop.f32.mrf.mxu0
        %v1513 = vadd.f32 0.0, %v1512
        %1514 = vmatmul.bf16.gmra.mxu0 %v1493
        %v1515 = vpop.f32.mrf.mxu0
        %v1516 = vadd.f32 0.0, %v1515
        %v1517 = vpop.f32.mrf.mxu0
        %1518 = vdwg.mxu0
        %v1519 = vmul.f32 %v1511, 0.17677669
        %v1520 = vmul.f32 %v1513, 0.17677669
        %v1521 = vmul.f32 %v1516, 0.17677669
        %v1522 = vadd.f32 %v1519, %v1020
        %v1523 = vadd.f32 %v1520, %v1021
        %v1524 = vadd.f32 %v1521, %v1022
        %v1525 = vsel %vm1094, %v1522, -inf
        %1526 = vmax.xlane.f32.xlu0 %v1525
        %v1527 = vpop.xlane.xlu0 %1526
        %v1528 = vsel %vm1094, %v1523, -inf
        %1529 = vmax.xlane.f32.xlu0 %v1528
        %v1530 = vpop.xlane.xlu0 %1529
        %v1531 = vsel %vm1101, %v1524, -inf
        %1532 = vmax.xlane.f32.xlu0 %v1531
        %v1533 = vpop.xlane.xlu0 %1532
        %v1534 = vsub.f32 %v1522, %v1527
        %v1535 = vsub.f32 %v1523, %v1530
        %v1536 = vsub.f32 %v1524, %v1533
        %v1537 = vmul.f32 %v1534, 1.442695
        %v1538 = vpow.pop %v1537
        %v1539 = vmul.f32 %v1535, 1.442695
        %v1540 = vpow.pop %v1539
        %v1541 = vmul.f32 %v1536, 1.442695
        %v1542 = vpow.pop %v1541
        %v1543 = vsel %vm1094, %v1538, 0.0
        %1544 = vadd.xlane.f32.xlu0 %v1543
        %v1545 = vpop.xlane.xlu0 %1544
        %v1546 = vsel %vm1094, %v1540, 0.0
        %1547 = vadd.xlane.f32.xlu0 %v1546
        %v1548 = vpop.xlane.xlu0 %1547
        %v1549 = vsel %vm1101, %v1542, 0.0
        %1550 = vadd.xlane.f32.xlu0 %v1549
        %v1551 = vpop.xlane.xlu0 %1550
        %v1552 = vrcp.pop %v1545
        %v1553 = vrcp.pop %v1548
        %v1554 = vrcp.pop %v1551
        %v1555 = vmul.f32 %v1538, %v1552
        %v1556 = vmul.f32 %v1540, %v1553
        %v1557 = vmul.f32 %v1542, %v1554
        %s1558 = scalar_lea.vmem %s783, 72
        %1559 = vst.msk [vmem:[%s1558] sm:$0xff] %vm1094, %v1555
        %1560 = vst.msk [vmem:[%s1558 + $0x8] sm:$0xff] %vm1094, %v1556
        %1561 = vst.msk [vmem:[%s1558 + $0x10] sm:$0x3] %vm1101, %v1557
        %v1562 = vpack.c.bf16 %v1556, %v1555
        %v1563 = vpack.c.bf16 %v1557, %v1557
        %1566 = vrot.lane.b32.xlu0 %v1481, 64
        %v1567 = vpop.permute.xlu0 %1566
        %1568 = vrot.lane.b32.xlu0 %v1482, 64
        %v1569 = vpop.permute.xlu0 %1568
        %v1572 = vsel %vm1094, %v1562, 0
        %v1575 = vsel %vm1094, %v1563, 0
        %v1578 = vsel %vm1255, %v1569, 0
        %1580 = vmatpush.bf16.msra.mxu0 0
        %1581 = vmatpush.bf16.msra.mxu0 0
        %1582 = vmatpush.bf16.msra.mxu0 0
        %1583 = vmatpush.bf16.msra.mxu0 0
        %1584 = vmatpush.bf16.msra.mxu0 0
        %1585 = vmatpush.bf16.msra.mxu0 0
        %1586 = vmatpush.bf16.msra.mxu0 %v1578
        %1587 = vmatpush.bf16.msra.mxu0 %v1567
        %1588 = vmatmul.bf16.gmra.mxu0 %v1572
        %v1589 = vpop.f32.mrf.mxu0
        %v1590 = vadd.f32 0.0, %v1589
        %v1591 = vpop.f32.mrf.mxu0
        %v1592 = vadd.f32 0.0, %v1591
        %1593 = vmatmul.bf16.gmra.mxu0 %v1575
        %v1594 = vpop.f32.mrf.mxu0
        %v1595 = vadd.f32 0.0, %v1594
        %v1596 = vpop.f32.mrf.mxu0
        %1597 = vdwg.mxu0
        %v1598 = vadd.f32 %v1453, %v1590
        %v1599 = vadd.f32 %v1454, %v1592
        %v1600 = vadd.f32 %v1455, %v1595
        %v1601 = vadd.f32 %v882, %v1598
        %v1602 = vadd.f32 %v883, %v1599
        %v1603 = vadd.f32 %v884, %v1600
        %v1604 = vld [vmem:[%s759] sm:$0x1]
        %v1605 = vld [vmem:[%s762] sm:$0x1]
        %v1606 = vsel %vm887, %v1601, 0.0
        %1607 = vadd.xlane.f32.xlu0 %v1606
        %v1608 = vpop.xlane.xlu0 %1607
        %v1609 = vsel %vm887, %v1602, 0.0
        %1610 = vadd.xlane.f32.xlu0 %v1609
        %v1611 = vpop.xlane.xlu0 %1610
        %v1612 = vsel %vm894, %v1603, 0.0
        %1613 = vadd.xlane.f32.xlu0 %v1612
        %v1614 = vpop.xlane.xlu0 %1613
        %v1615 = vmul.f32 %v1608, %v904
        %v1616 = vmul.f32 %v1611, %v904
        %v1617 = vmul.f32 %v1614, %v904
        %v1618 = vsub.f32 %v1601, %v1615
        %v1619 = vsub.f32 %v1602, %v1616
        %v1620 = vsub.f32 %v1603, %v1617
        %v1621 = vmul.f32 %v1618, %v1618
        %v1622 = vmul.f32 %v1619, %v1619
        %v1623 = vmul.f32 %v1620, %v1620
        %v1624 = vsel %vm887, %v1621, 0.0
        %1625 = vadd.xlane.f32.xlu0 %v1624
        %v1626 = vpop.xlane.xlu0 %1625
        %v1627 = vsel %vm887, %v1622, 0.0
        %1628 = vadd.xlane.f32.xlu0 %v1627
        %v1629 = vpop.xlane.xlu0 %1628
        %v1630 = vsel %vm894, %v1623, 0.0
        %1631 = vadd.xlane.f32.xlu0 %v1630
        %v1632 = vpop.xlane.xlu0 %1631
        %v1633 = vmul.f32 %v1626, %v904
        %v1634 = vmul.f32 %v1629, %v904
        %v1635 = vmul.f32 %v1632, %v904
        %v1636 = vadd.f32 %v1633, 1e-05
        %v1637 = vadd.f32 %v1634, 1e-05
        %v1638 = vadd.f32 %v1635, 1e-05
        %v1639 = vrsqrt.pop %v1636
        %v1640 = vmul.f32 %v1639, %v1636
        %v1641 = vmul.f32 %v1640, %v1639
        %v1642 = vmul.f32 0.5, %v1641
        %v1643 = vsub.f32 1.5, %v1642
        %v1644 = vmul.f32 %v1639, %v1643
        %vm1645 = vweird.f32 %v1636
        %vm1646 = vweird.f32 %v1639
        %vm1647 = vmor %vm1645, %vm1646
        %v1648 = vsel %vm1647, %v1639, %v1644
        %v1649 = vrsqrt.pop %v1637
        %v1650 = vmul.f32 %v1649, %v1637
        %v1651 = vmul.f32 %v1650, %v1649
        %v1652 = vmul.f32 0.5, %v1651
        %v1653 = vsub.f32 1.5, %v1652
        %v1654 = vmul.f32 %v1649, %v1653
        %vm1655 = vweird.f32 %v1637
        %vm1656 = vweird.f32 %v1649
        %vm1657 = vmor %vm1655, %vm1656
        %v1658 = vsel %vm1657, %v1649, %v1654
        %v1659 = vrsqrt.pop %v1638
        %v1660 = vmul.f32 %v1659, %v1638
        %v1661 = vmul.f32 %v1660, %v1659
        %v1662 = vmul.f32 0.5, %v1661
        %v1663 = vsub.f32 1.5, %v1662
        %v1664 = vmul.f32 %v1659, %v1663
        %vm1665 = vweird.f32 %v1638
        %vm1666 = vweird.f32 %v1659
        %vm1667 = vmor %vm1665, %vm1666
        %v1668 = vsel %vm1667, %v1659, %v1664
        %v1669 = vmul.f32 %v1618, %v1648
        %v1670 = vmul.f32 %v1619, %v1658
        %v1671 = vmul.f32 %v1620, %v1668
        %v1673 = vperm.slane %v1604, 0
        %v1675 = vmul.f32 %v1669, %v1673
        %v1676 = vmul.f32 %v1670, %v1673
        %v1677 = vmul.f32 %v1671, %v1673
        %v1679 = vperm.slane %v1605, 0
        %v1681 = vadd.f32 %v1675, %v1679
        %v1682 = vadd.f32 %v1676, %v1679
        %v1683 = vadd.f32 %v1677, %v1679
        %v1684 = vpack.c.bf16 %v1682, %v1681
        %v1685 = vpack.c.bf16 %v1683, %v1683
        %v1686 = vld [vmem:[%s767] sm:$0xf]
        %v1687 = vld [vmem:[%s767 + $0x4] sm:$0xf]
        %v1688 = vld [vmem:[%s767 + $0x8] sm:$0xf]
        %v1689 = vld [vmem:[%s767 + $0xc] sm:$0xf]
        %v1690 = vld [vmem:[%s770] sm:$0x1]
        %v1692 = vperm.slane %v1690, 0
        %v1698 = vunpack.c.l.b16 %v1686
        %v1699 = vunpack.c.l.b16 %v1687
        %v1700 = vunpack.c.l.b16 %v1688
        %v1701 = vunpack.c.l.b16 %v1689
        %v1702 = vpack.c.b16 %v1699, %v1698
        %v1703 = vpack.c.b16 %v1701, %v1700
        %v1707 = vsel %vm887, %v1684, 0
        %v1710 = vsel %vm887, %v1685, 0
        %1712 = vmatpush.bf16.msra.mxu0 0
        %1713 = vmatpush.bf16.msra.mxu0 0
        %1714 = vmatpush.bf16.msra.mxu0 0
        %1715 = vmatpush.bf16.msra.mxu0 0
        %1716 = vmatpush.bf16.msra.mxu0 0
        %1717 = vmatpush.bf16.msra.mxu0 0
        %1718 = vmatpush.bf16.msra.mxu0 %v1703
        %1719 = vmatpush.bf16.msra.mxu0 %v1702
        %1720 = vmatmul.bf16.gmra.mxu0 %v1707
        %v1721 = vpop.f32.mrf.mxu0
        %v1722 = vadd.f32 %v1692, %v1721
        %v1723 = vpop.f32.mrf.mxu0
        %v1724 = vadd.f32 %v1692, %v1723
        %1725 = vmatmul.bf16.gmra.mxu0 %v1710
        %v1726 = vpop.f32.mrf.mxu0
        %v1727 = vadd.f32 %v1692, %v1726
        %v1728 = vpop.f32.mrf.mxu0
        %1729 = vdwg.mxu0
        %v1730 = vmul.f32 %v1722, 0.5
        %v1731 = vmul.f32 %v1724, 0.5
        %v1732 = vmul.f32 %v1727, 0.5
        %v1733 = vmul.f32 %v1722, 0.044715
        %v1734 = vmul.f32 %v1724, 0.044715
        %v1735 = vmul.f32 %v1727, 0.044715
        %v1736 = vmul.f32 %v1733, %v1722
        %v1737 = vmul.f32 %v1734, %v1724
        %v1738 = vmul.f32 %v1735, %v1727
        %v1739 = vmul.f32 %v1736, %v1722
        %v1740 = vmul.f32 %v1737, %v1724
        %v1741 = vmul.f32 %v1738, %v1727
        %v1742 = vadd.f32 %v1722, %v1739
        %v1743 = vadd.f32 %v1724, %v1740
        %v1744 = vadd.f32 %v1727, %v1741
        %v1745 = vmul.f32 %v1742, 0.7978846
        %v1746 = vmul.f32 %v1743, 0.7978846
        %v1747 = vmul.f32 %v1744, 0.7978846
        %v1748 = vtanh.pop %v1745
        %v1749 = vtanh.pop %v1746
        %v1750 = vtanh.pop %v1747
        %v1751 = vadd.f32 %v1748, 1.0
        %v1752 = vadd.f32 %v1749, 1.0
        %v1753 = vadd.f32 %v1750, 1.0
        %v1754 = vmul.f32 %v1730, %v1751
        %v1755 = vmul.f32 %v1731, %v1752
        %v1756 = vmul.f32 %v1732, %v1753
        %v1757 = vpack.c.bf16 %v1755, %v1754
        %v1758 = vpack.c.bf16 %v1756, %v1756
        %v1759 = vld [vmem:[%s775] sm:$0xf]
        %v1760 = vld [vmem:[%s775 + $0x4] sm:$0xf]
        %v1761 = vld [vmem:[%s775 + $0x8] sm:$0xf]
        %v1762 = vld [vmem:[%s775 + $0xc] sm:$0xf]
        %v1763 = vld [vmem:[%s775 + $0x10] sm:$0xf]
        %v1764 = vld [vmem:[%s775 + $0x14] sm:$0xf]
        %v1765 = vld [vmem:[%s775 + $0x18] sm:$0xf]
        %v1766 = vld [vmem:[%s775 + $0x1c] sm:$0xf]
        %v1767 = vld [vmem:[%s778] sm:$0x1]
        %v1769 = vperm.slane %v1767, 0
        %v1779 = vunpack.c.l.b16 %v1759
        %v1780 = vunpack.c.l.b16 %v1760
        %v1781 = vunpack.c.l.b16 %v1761
        %v1782 = vunpack.c.l.b16 %v1762
        %v1783 = vunpack.c.l.b16 %v1763
        %v1784 = vunpack.c.l.b16 %v1764
        %v1785 = vunpack.c.l.b16 %v1765
        %v1786 = vunpack.c.l.b16 %v1766
        %v1787 = vpack.c.b16 %v1780, %v1779
        %v1788 = vpack.c.b16 %v1782, %v1781
        %v1789 = vpack.c.b16 %v1784, %v1783
        %v1790 = vpack.c.b16 %v1786, %v1785
        %vm1795 = vcmask 523264
        %v1797 = vsel %vm1795, %v1757, 0
        %v1800 = vsel %vm1795, %v1758, 0
        %1802 = vmatpush.bf16.msra.mxu0 0
        %1803 = vmatpush.bf16.msra.mxu0 0
        %1804 = vmatpush.bf16.msra.mxu0 0
        %1805 = vmatpush.bf16.msra.mxu0 0
        %1806 = vmatpush.bf16.msra.mxu0 %v1790
        %1807 = vmatpush.bf16.msra.mxu0 %v1789
        %1808 = vmatpush.bf16.msra.mxu0 %v1788
        %1809 = vmatpush.bf16.msra.mxu0 %v1787
        %1810 = vmatmul.bf16.gmra.mxu0 %v1797
        %v1811 = vpop.f32.mrf.mxu0
        %v1812 = vadd.f32 %v1769, %v1811
        %v1813 = vpop.f32.mrf.mxu0
        %v1814 = vadd.f32 %v1769, %v1813
        %1815 = vmatmul.bf16.gmra.mxu0 %v1800
        %v1816 = vpop.f32.mrf.mxu0
        %v1817 = vadd.f32 %v1769, %v1816
        %v1818 = vpop.f32.mrf.mxu0
        %1819 = vdwg.mxu0
        %v1820 = vadd.f32 %v1601, %v1812
        %v1821 = vadd.f32 %v1602, %v1814
        %v1822 = vadd.f32 %v1603, %v1817
        %1823 = vst.msk [vmem:[#allocation2] sm:$0xff] %vm887, %v1820
        %1824 = vst.msk [vmem:[#allocation2 + $0x8] sm:$0xff] %vm887, %v1821
        %1825 = vst.msk [vmem:[#allocation2 + $0x10] sm:$0x3] %vm894, %v1822
        %p1826 = scmp.eq.s32.totalorder %s34, 1
        // Predicated region
        $region105: #{tpu_custom_call.1} parent=95 // pred_check
          %p1827 = pneg %p1826
        $region106: #{tpu_custom_call.1} parent=95 // pred_check_branch
          %1829 = sbr.rel (%p1827) target = $region108
        $region107: #{tpu_custom_call.1} parent=95 // pred_region
          %v1830 = vld [vmem:[%s15] sm:$0x1]
          %v1831 = vld [vmem:[%s16] sm:$0x1]
          %v1832 = vsel %vm887, %v1820, 0.0
          %1833 = vadd.xlane.f32.xlu0 %v1832
          %v1834 = vpop.xlane.xlu0 %1833
          %vm1835 = vcmask 253952
          %v1836 = vsel %vm1835, %v1821, 0.0
          %1837 = vadd.xlane.f32.xlu0 %v1836
          %v1838 = vpop.xlane.xlu0 %1837
          %v1839 = vmul.f32 %v1834, %v904
          %v1840 = vmul.f32 %v1838, %v904
          %v1841 = vsub.f32 %v1820, %v1839
          %v1842 = vsub.f32 %v1821, %v1840
          %v1843 = vmul.f32 %v1841, %v1841
          %v1844 = vmul.f32 %v1842, %v1842
          %v1845 = vsel %vm887, %v1843, 0.0
          %1846 = vadd.xlane.f32.xlu0 %v1845
          %v1847 = vpop.xlane.xlu0 %1846
          %v1848 = vsel %vm1835, %v1844, 0.0
          %1849 = vadd.xlane.f32.xlu0 %v1848
          %v1850 = vpop.xlane.xlu0 %1849
          %v1851 = vmul.f32 %v1847, %v904
          %v1852 = vmul.f32 %v1850, %v904
          %v1853 = vadd.f32 %v1851, 1e-05
          %v1854 = vadd.f32 %v1852, 1e-05
          %v1855 = vrsqrt.pop %v1853
          %v1856 = vmul.f32 %v1855, %v1853
          %v1857 = vmul.f32 %v1856, %v1855
          %v1858 = vmul.f32 0.5, %v1857
          %v1859 = vsub.f32 1.5, %v1858
          %v1860 = vmul.f32 %v1855, %v1859
          %vm1861 = vweird.f32 %v1853
          %vm1862 = vweird.f32 %v1855
          %vm1863 = vmor %vm1861, %vm1862
          %v1864 = vsel %vm1863, %v1855, %v1860
          %v1865 = vrsqrt.pop %v1854
          %v1866 = vmul.f32 %v1865, %v1854
          %v1867 = vmul.f32 %v1866, %v1865
          %v1868 = vmul.f32 0.5, %v1867
          %v1869 = vsub.f32 1.5, %v1868
          %v1870 = vmul.f32 %v1865, %v1869
          %vm1871 = vweird.f32 %v1854
          %vm1872 = vweird.f32 %v1865
          %vm1873 = vmor %vm1871, %vm1872
          %v1874 = vsel %vm1873, %v1865, %v1870
          %v1875 = vmul.f32 %v1841, %v1864
          %v1876 = vmul.f32 %v1842, %v1874
          %v1878 = vperm.slane %v1830, 0
          %v1880 = vmul.f32 %v1875, %v1878
          %v1881 = vmul.f32 %v1876, %v1878
          %v1883 = vperm.slane %v1831, 0
          %v1885 = vadd.f32 %v1880, %v1883
          %v1886 = vadd.f32 %v1881, %v1883
          %v1887 = vpack.c.bf16 %v1886, %v1885
          %v1888 = vld [vmem:[%s17] sm:$0xf]
          %v1889 = vld [vmem:[%s17 + $0x4] sm:$0xf]
          %v1890 = vld [vmem:[%s17 + $0x8] sm:$0xf]
          %v1891 = vld [vmem:[%s17 + $0xc] sm:$0xf]
          %v1892 = vld [vmem:[%s18] sm:$0x1]
          %v1894 = vperm.slane %v1892, 0
          %v1900 = vunpack.c.l.b16 %v1888
          %v1901 = vunpack.c.l.b16 %v1889
          %v1902 = vunpack.c.l.b16 %v1890
          %v1903 = vunpack.c.l.b16 %v1891
          %v1904 = vpack.c.b16 %v1901, %v1900
          %v1905 = vpack.c.b16 %v1903, %v1902
          %v1909 = vsel %vm887, %v1887, 0
          %1911 = vmatpush.bf16.msra.mxu0 0
          %1912 = vmatpush.bf16.msra.mxu0 0
          %1913 = vmatpush.bf16.msra.mxu0 0
          %1914 = vmatpush.bf16.msra.mxu0 0
          %1915 = vmatpush.bf16.msra.mxu0 0
          %1916 = vmatpush.bf16.msra.mxu0 0
          %1917 = vmatpush.bf16.msra.mxu0 %v1905
          %1918 = vmatpush.bf16.msra.mxu0 %v1904
          %1919 = vmatmul.bf16.gmra.mxu0 %v1909
          %v1920 = vpop.f32.mrf.mxu0
          %v1921 = vadd.f32 %v1894, %v1920
          %v1922 = vpop.f32.mrf.mxu0
          %v1923 = vadd.f32 %v1894, %v1922
          %1924 = vdwg.mxu0
          %vm1925 = vcmask 80896
          %1926 = vst.msk [vmem:[#allocation6] sm:$0xff] %vm1925, %v1921
          %vm1927 = vcmask 73728
          %1928 = vst.msk [vmem:[#allocation6 + $0x8] sm:$0x1] %vm1927, %v1923
        $region108: #{tpu_custom_call.1} parent=95 // pred_fallthru
          _
        %p1929 = scmp.lt.s32.totalorder %s34, 1
        %s1930 = scalar_select %p1929, %s34, 1
        %s1931 = smul.addr %s1930, 12
        %s1932 = smul.addr %s1931, 8
        %s1933 = scalar_lea.vmem %s20, %s1932
        // Predicated region
        $region109: #{tpu_custom_call.1} parent=95 // pred_check
          %p1934 = pneg %p496
        $region110: #{tpu_custom_call.1} parent=95 // pred_check_branch
          %1936 = sbr.rel (%p1934) target = $region112
        $region111: #{tpu_custom_call.1} parent=95 // pred_region
          %1938 = vsyncadd [#allocation5], 0
          %s1939 = sshll.u32 [#allocation6], 4
          %s1940 = int_to_ptr.vmem [resolvable:$true] %s1939
          %s1941 = sshll.u32 %s19, 4
          %s1942 = int_to_ptr.hbm [resolvable:$true] %s1941
          %1947 = dma.vmem_to_hbm [thread:$0]  %s1940, 256, %s1942, [#allocation5], 128, 128, 8
        $region112: #{tpu_custom_call.1} parent=95 // pred_fallthru
          _
        // Predicated region
        $region113: #{tpu_custom_call.1} parent=95 // pred_check
          %p1948 = pneg %p522
        $region114: #{tpu_custom_call.1} parent=95 // pred_check_branch
          %1950 = sbr.rel (%p1948) target = $region116
        $region115: #{tpu_custom_call.1} parent=95 // pred_region
          _
        $region116: #{tpu_custom_call.1} parent=95 // pred_fallthru
          _
        // Predicated region
        $region117: #{tpu_custom_call.1} parent=95 // pred_check
          %p1951 = pneg %p496
        $region118: #{tpu_custom_call.1} parent=95 // pred_check_branch
          %1953 = sbr.rel (%p1951) target = $region120
        $region119: #{tpu_custom_call.1} parent=95 // pred_region
          %1955 = dma.done [#allocation5], 256
        $region120: #{tpu_custom_call.1} parent=95 // pred_fallthru
          _
      $region96: #{tpu_custom_call.1} parent=5 // pred_fallthru
        _
      %p1956 = scmp.le.s32.totalorder 2, %s29
      // Predicated region
      $region121: #{tpu_custom_call.1} parent=5 // pred_check
        %p1957 = pneg %p1956
      $region122: #{tpu_custom_call.1} parent=5 // pred_check_branch
        %1959 = sbr.rel (%p1957) target = $region124
      $region123: #{tpu_custom_call.1} parent=5 // pred_region
        %s1960 = ssub.s32 %s29, 2
        // Predicated region
        $region125: #{tpu_custom_call.1} parent=123 // pred_check
          %p1961 = pneg %p528
        $region126: #{tpu_custom_call.1} parent=123 // pred_check_branch
          %1963 = sbr.rel (%p1961) target = $region128
        $region127: #{tpu_custom_call.1} parent=123 // pred_region
          %p1964 = scmp.lt.s32.totalorder %s35, 1
          %s1965 = scalar_select %p1964, %s35, 1
          %s1966 = smul.addr %s1965, 12
          %s1967 = smul.addr %s1966, 8
          %s1968 = scalar_lea.vmem %s20, %s1967
        $region128: #{tpu_custom_call.1} parent=123 // pred_fallthru
          _
      $region124: #{tpu_custom_call.1} parent=5 // pred_fallthru
        _
    $region6: #{tpu_custom_call.1} parent=1 // loop_footer
      %s33 = sadd.s32 1, %s29
    $region7: #{tpu_custom_call.1} parent=1 // loop_footer_branch
      %28 = sbr.rel target = $region3
    $region8: #{tpu_custom_call.1} parent=1 // loop_exit
      _
    %1969 = vsyncpa [#allocation4], 1
    %s1970 = scalar_lea.sflag [#allocation4], 1
    %1971 = vsyncpa %s1970, 1
    %1972 = vsyncpa [#allocation5], 1
    %s1973 = scalar_lea.sflag [#allocation5], 1
    %1974 = vsyncpa %s1973, 1

</llo_original>
